<compile_context>
chip_gen: v7x
topology: tpu7x:2x2x1
jax: 0.10.0
libtpu: 0.0.40
codegen_flags: <defaults>
</compile_context>

<pallas_src>
import numpy as np
import jax
import jax.numpy as jnp
from jax.experimental import pallas as pl
from jax.experimental.pallas import tpu as pltpu


def gru_mlp_kernel(seq_ref, x_ref,
                   w_ih_ref, w_hh_ref, b_gi_ref, b_hn_ref,
                   w_comb_ref, w_out_h_ref, b_comb_ref,
                   out_ref):
    BT, _ = seq_ref.shape
    B = x_ref.shape[0]
    T = BT // B
    Hp = w_hh_ref.shape[0]          # per-gate lane-padded hidden width (128)

    # --- hoisted input projection: ONE matmul for every timestep ------------
    # gi_all rows are (b, t) in batch-major order; biases (b_ih + b_hh for r,z
    # and b_ih for n) are already folded in, so no per-step bias add is needed
    # on the gi side.
    gi_all = (jnp.dot(seq_ref[...], w_ih_ref[...],
                      preferred_element_type=jnp.float32)
              + b_gi_ref[...])                      # (B*T, 3*Hp)
    gi3 = gi_all.reshape(B, T, 3 * Hp)              # sublane-aligned split

    w_hh = w_hh_ref[...]                            # (Hp, 3*Hp)
    b_hn = b_hn_ref[...]                            # (1, Hp)

    # --- serial GRU recurrence (fully unrolled, only gh on the MXU path) ----
    h = jnp.zeros((B, Hp), jnp.float32)             # pad lanes stay exactly 0
    for t in range(T):
        gi = gi3[:, t, :]                           # (B, 3*Hp), static slice
        gh = jnp.dot(h, w_hh, preferred_element_type=jnp.float32)
        r = jax.nn.sigmoid(gi[:, 0 * Hp:1 * Hp] + gh[:, 0 * Hp:1 * Hp])
        z = jax.nn.sigmoid(gi[:, 1 * Hp:2 * Hp] + gh[:, 1 * Hp:2 * Hp])
        n = jnp.tanh(gi[:, 2 * Hp:3 * Hp] + r * (gh[:, 2 * Hp:3 * Hp] + b_hn))
        h = (1.0 - z) * n + z * h

    # --- epilogue: MLP branch folded into the output projection -------------
    # out = mlp(x) @ W_out[:, :H].T + h_last @ W_out[:, H:].T + b_out
    #     = x @ (w_mlp.T @ w_out_x) + h_last @ w_out_h + (b_mlp @ w_out_x + b_out)
    out = (jnp.dot(x_ref[...], w_comb_ref[...],
                   preferred_element_type=jnp.float32)
           + jnp.dot(h, w_out_h_ref[...], preferred_element_type=jnp.float32)
           + b_comb_ref[...])
    out_ref[...] = out.astype(out_ref.dtype)


def model_forward(x, seq, params):
    """x: (B, D_in) f32, seq: (B, T, D_seq) f32 -> (B, D_out) f32."""
    B, _ = x.shape
    _, T, D_seq = seq.shape
    D_out = params["b_comb"].shape[-1]

    # Free (contiguous) reshape — no transpose, no extra HBM pass.
    seq_flat = seq.reshape(B * T, D_seq)

    vmem = pl.BlockSpec(memory_space=pltpu.MemorySpace.VMEM)
    inputs = (
        seq_flat, x,
        params["w_ih_pad"], params["w_hh_pad"],
        params["b_gi_pad"], params["b_hn_pad"],
        params["w_comb"], params["w_out_h_pad"], params["b_comb"],
    )
    return pl.pallas_call(
        gru_mlp_kernel,
        out_shape=jax.ShapeDtypeStruct((B, D_out), jnp.float32),
        in_specs=[vmem] * len(inputs),
        out_specs=pl.BlockSpec(memory_space=pltpu.MemorySpace.VMEM),
    )(*inputs)


def make_params(key, input_size_seq, input_size, hidden_size, output_size,
                gate_pad=128):
    """PyTorch-style init, then pre-packed/folded for the kernel."""
    ks = jax.random.split(key, 8)
    H = hidden_size
    kg = 1.0 / np.sqrt(H)
    km = 1.0 / np.sqrt(input_size)
    ko = 1.0 / np.sqrt(2 * H)
    u = lambda k, shape, b: jax.random.uniform(k, shape, jnp.float32, -b, b)

    # GRU weights in PyTorch layout (3H, D) / (3H, H); gate order r, z, n.
    w_ih = u(ks[0], (3 * H, input_size_seq), kg)
    w_hh = u(ks[1], (3 * H, H), kg)
    b_ih = u(ks[2], (3 * H,), kg)
    b_hh = u(ks[3], (3 * H,), kg)
    w_mlp = u(ks[4], (H, input_size), km)
    b_mlp = u(ks[5], (H,), km)
    w_out = u(ks[6], (output_size, 2 * H), ko)
    b_out = u(ks[7], (output_size,), ko)

    Hp = max(gate_pad, H)   # pad each gate to a full 128-lane tile

    def pad_gate_cols(w_t):           # (in, 3H) -> (in, 3*Hp), zero-padded per gate
        gates = [jnp.pad(w_t[:, g * H:(g + 1) * H], ((0, 0), (0, Hp - H)))
                 for g in range(3)]
        return jnp.concatenate(gates, axis=1)

    def pad_gate_vec(v):              # (3H,) -> (1, 3*Hp)
        gates = [jnp.pad(v[g * H:(g + 1) * H], (0, Hp - H)) for g in range(3)]
        return jnp.concatenate(gates)[None, :]

    w_ih_pad = pad_gate_cols(w_ih.T)                                  # (D_seq, 3Hp)
    w_hh_pad = jnp.pad(pad_gate_cols(w_hh.T), ((0, Hp - H), (0, 0)))  # (Hp, 3Hp)

    # Fold biases: r,z get b_ih + b_hh (added once via the hoisted gi matmul);
    # n keeps b_ih in gi and b_hh_n separately inside the r-gated term.
    b_gi = jnp.concatenate([b_ih[:H] + b_hh[:H],
                            b_ih[H:2 * H] + b_hh[H:2 * H],
                            b_ih[2 * H:]])
    b_gi_pad = pad_gate_vec(b_gi)                                     # (1, 3Hp)
    b_hn_pad = jnp.pad(b_hh[2 * H:], (0, Hp - H))[None, :]            # (1, Hp)

    # Fold the (purely linear) MLP into the output projection.
    w_out_x = w_out[:, :H].T                                          # (H, D_out)
    w_out_h = w_out[:, H:].T                                          # (H, D_out)
    w_comb = w_mlp.T @ w_out_x                                        # (D_in, D_out)
    b_comb = (b_mlp @ w_out_x + b_out)[None, :]                       # (1, D_out)
    w_out_h_pad = jnp.pad(w_out_h, ((0, Hp - H), (0, 0)))             # (Hp, D_out)

    return dict(
        # kernel-side (packed/folded) params
        w_ih_pad=w_ih_pad, w_hh_pad=w_hh_pad,
        b_gi_pad=b_gi_pad, b_hn_pad=b_hn_pad,
        w_comb=w_comb, w_out_h_pad=w_out_h_pad, b_comb=b_comb,
        # reference (unfolded) params
        w_ih_t=w_ih.T, w_hh_t=w_hh.T, b_ih=b_ih, b_hh=b_hh,
        w_mlp_t=w_mlp.T, b_mlp=b_mlp, w_out=w_out, b_out=b_out,
    )


def ref_forward(x, seq, p, hidden_size):
    """Pure-JAX reference mirroring torch.nn.GRU + Linear semantics."""
    B, T, _ = seq.shape
    H = hidden_size
    h = jnp.zeros((B, H), jnp.float32)
    for t in range(T):
        xt = seq[:, t, :]
        gi = xt @ p["w_ih_t"] + p["b_ih"]
        gh = h @ p["w_hh_t"] + p["b_hh"]
        r = jax.nn.sigmoid(gi[:, :H] + gh[:, :H])
        z = jax.nn.sigmoid(gi[:, H:2 * H] + gh[:, H:2 * H])
        n = jnp.tanh(gi[:, 2 * H:] + r * gh[:, 2 * H:])
        h = (1.0 - z) * n + z * h
    xm = x @ p["w_mlp_t"] + p["b_mlp"]
    return jnp.concatenate([xm, h], axis=1) @ p["w_out"].T + p["b_out"]


if __name__ == "__main__":
    batch = 2
    seq_len = 8
    input_size_seq = 16
    input_size = 32
    hidden_size = 32
    output_size = 16

    root = jax.random.PRNGKey(0)
    kx, kseq, kparams = jax.random.split(root, 3)

    x = jax.random.normal(kx, (batch, input_size), jnp.float32)
    seq = jax.random.normal(kseq, (batch, seq_len, input_size_seq), jnp.float32)
    params = make_params(kparams, input_size_seq, input_size, hidden_size,
                         output_size)

    out = model_forward(x, seq, params)
    out = jax.block_until_ready(out)

    ref = ref_forward(x, seq, params, hidden_size)
    np.testing.assert_allclose(np.asarray(out), np.asarray(ref),
                               rtol=1e-4, atol=1e-4)

    assert out.shape == (batch, output_size)
    print("KERNEL_OK")
</pallas_src>

<mosaic_0001>
module attributes {stable_mosaic.version = 11 : i64} {
  func.func @gru_mlp_kernel(%arg0: memref<16x16xf32, #tpu.memory_space<vmem>>, %arg1: memref<2x32xf32, #tpu.memory_space<vmem>>, %arg2: memref<16x384xf32, #tpu.memory_space<vmem>>, %arg3: memref<128x384xf32, #tpu.memory_space<vmem>>, %arg4: memref<1x384xf32, #tpu.memory_space<vmem>>, %arg5: memref<1x128xf32, #tpu.memory_space<vmem>>, %arg6: memref<32x16xf32, #tpu.memory_space<vmem>>, %arg7: memref<128x16xf32, #tpu.memory_space<vmem>>, %arg8: memref<1x16xf32, #tpu.memory_space<vmem>>, %arg9: memref<2x16xf32, #tpu.memory_space<vmem>>) attributes {dimension_semantics = [], scalar_prefetch = 0 : i64, scratch_operands = 0 : i64, tpu.core_type = #tpu.core_type<tc>} {
    %c0 = arith.constant 0 : index
    %c0_0 = arith.constant 0 : index
    %0 = vector.load %arg0[%c0, %c0_0] : memref<16x16xf32, #tpu.memory_space<vmem>>, vector<16x16xf32>
    %c0_1 = arith.constant 0 : index
    %c0_2 = arith.constant 0 : index
    %1 = vector.load %arg2[%c0_1, %c0_2] : memref<16x384xf32, #tpu.memory_space<vmem>>, vector<16x384xf32>
    %cst = arith.constant dense<0.000000e+00> : vector<16x384xf32>
    %2 = tpu.matmul %0, %1, %cst {dimension_numbers = #tpu.dot_dimension_numbers<[1], [0], [0], [1], [0, 0, 1, 1], [], []>} : vector<16x16xf32>, vector<16x384xf32>, vector<16x384xf32> -> vector<16x384xf32>
    %c0_3 = arith.constant 0 : index
    %c0_4 = arith.constant 0 : index
    %3 = vector.load %arg4[%c0_3, %c0_4] : memref<1x384xf32, #tpu.memory_space<vmem>>, vector<1x384xf32>
    %4 = vector.broadcast %3 : vector<1x384xf32> to vector<16x384xf32>
    %5 = arith.addf %2, %4 : vector<16x384xf32>
    %6 = vector.shape_cast %5 : vector<16x384xf32> to vector<2x8x384xf32>
    %c0_5 = arith.constant 0 : index
    %c0_6 = arith.constant 0 : index
    %7 = vector.load %arg3[%c0_5, %c0_6] : memref<128x384xf32, #tpu.memory_space<vmem>>, vector<128x384xf32>
    %c0_7 = arith.constant 0 : index
    %c0_8 = arith.constant 0 : index
    %8 = vector.load %arg5[%c0_7, %c0_8] : memref<1x128xf32, #tpu.memory_space<vmem>>, vector<1x128xf32>
    %cst_9 = arith.constant 0.000000e+00 : f32
    %9 = vector.broadcast %cst_9 : f32 to vector<2x128xf32>
    %10 = vector.extract_strided_slice %6 {offsets = [0, 0, 0], sizes = [2, 1, 384], strides = [1, 1, 1]} : vector<2x8x384xf32> to vector<2x1x384xf32>
    %11 = vector.shape_cast %10 : vector<2x1x384xf32> to vector<2x384xf32>
    %cst_10 = arith.constant dense<0.000000e+00> : vector<2x384xf32>
    %12 = tpu.matmul %9, %7, %cst_10 {dimension_numbers = #tpu.dot_dimension_numbers<[1], [0], [0], [1], [0, 0, 1, 1], [], []>} : vector<2x128xf32>, vector<128x384xf32>, vector<2x384xf32> -> vector<2x384xf32>
    %13 = vector.extract_strided_slice %11 {offsets = [0, 0], sizes = [2, 128], strides = [1, 1]} : vector<2x384xf32> to vector<2x128xf32>
    %14 = vector.extract_strided_slice %12 {offsets = [0, 0], sizes = [2, 128], strides = [1, 1]} : vector<2x384xf32> to vector<2x128xf32>
    %15 = arith.addf %13, %14 : vector<2x128xf32>
    %16 = arith.negf %15 : vector<2x128xf32>
    %17 = math.exp %16 : vector<2x128xf32>
    %cst_11 = arith.constant 1.000000e+00 : f32
    %18 = vector.broadcast %cst_11 : f32 to vector<2x128xf32>
    %19 = arith.addf %18, %17 : vector<2x128xf32>
    %20 = arith.divf %18, %19 : vector<2x128xf32>
    %21 = vector.extract_strided_slice %11 {offsets = [0, 128], sizes = [2, 128], strides = [1, 1]} : vector<2x384xf32> to vector<2x128xf32>
    %22 = vector.extract_strided_slice %12 {offsets = [0, 128], sizes = [2, 128], strides = [1, 1]} : vector<2x384xf32> to vector<2x128xf32>
    %23 = arith.addf %21, %22 : vector<2x128xf32>
    %24 = arith.negf %23 : vector<2x128xf32>
    %25 = math.exp %24 : vector<2x128xf32>
    %cst_12 = arith.constant 1.000000e+00 : f32
    %26 = vector.broadcast %cst_12 : f32 to vector<2x128xf32>
    %27 = arith.addf %26, %25 : vector<2x128xf32>
    %28 = arith.divf %26, %27 : vector<2x128xf32>
    %29 = vector.extract_strided_slice %11 {offsets = [0, 256], sizes = [2, 128], strides = [1, 1]} : vector<2x384xf32> to vector<2x128xf32>
    %30 = vector.extract_strided_slice %12 {offsets = [0, 256], sizes = [2, 128], strides = [1, 1]} : vector<2x384xf32> to vector<2x128xf32>
    %31 = vector.broadcast %8 : vector<1x128xf32> to vector<2x128xf32>
    %32 = arith.addf %30, %31 : vector<2x128xf32>
    %33 = arith.mulf %20, %32 : vector<2x128xf32>
    %34 = arith.addf %29, %33 : vector<2x128xf32>
    %35 = math.tanh %34 : vector<2x128xf32>
    %cst_13 = arith.constant 1.000000e+00 : f32
    %36 = vector.broadcast %cst_13 : f32 to vector<2x128xf32>
    %37 = arith.subf %36, %28 : vector<2x128xf32>
    %38 = arith.mulf %37, %35 : vector<2x128xf32>
    %39 = arith.mulf %28, %9 : vector<2x128xf32>
    %40 = arith.addf %38, %39 : vector<2x128xf32>
    %41 = vector.extract_strided_slice %6 {offsets = [0, 1, 0], sizes = [2, 1, 384], strides = [1, 1, 1]} : vector<2x8x384xf32> to vector<2x1x384xf32>
    %42 = vector.shape_cast %41 : vector<2x1x384xf32> to vector<2x384xf32>
    %cst_14 = arith.constant dense<0.000000e+00> : vector<2x384xf32>
    %43 = tpu.matmul %40, %7, %cst_14 {dimension_numbers = #tpu.dot_dimension_numbers<[1], [0], [0], [1], [0, 0, 1, 1], [], []>} : vector<2x128xf32>, vector<128x384xf32>, vector<2x384xf32> -> vector<2x384xf32>
    %44 = vector.extract_strided_slice %42 {offsets = [0, 0], sizes = [2, 128], strides = [1, 1]} : vector<2x384xf32> to vector<2x128xf32>
    %45 = vector.extract_strided_slice %43 {offsets = [0, 0], sizes = [2, 128], strides = [1, 1]} : vector<2x384xf32> to vector<2x128xf32>
    %46 = arith.addf %44, %45 : vector<2x128xf32>
    %47 = arith.negf %46 : vector<2x128xf32>
    %48 = math.exp %47 : vector<2x128xf32>
    %cst_15 = arith.constant 1.000000e+00 : f32
    %49 = vector.broadcast %cst_15 : f32 to vector<2x128xf32>
    %50 = arith.addf %49, %48 : vector<2x128xf32>
    %51 = arith.divf %49, %50 : vector<2x128xf32>
    %52 = vector.extract_strided_slice %42 {offsets = [0, 128], sizes = [2, 128], strides = [1, 1]} : vector<2x384xf32> to vector<2x128xf32>
    %53 = vector.extract_strided_slice %43 {offsets = [0, 128], sizes = [2, 128], strides = [1, 1]} : vector<2x384xf32> to vector<2x128xf32>
    %54 = arith.addf %52, %53 : vector<2x128xf32>
    %55 = arith.negf %54 : vector<2x128xf32>
    %56 = math.exp %55 : vector<2x128xf32>
    %cst_16 = arith.constant 1.000000e+00 : f32
    %57 = vector.broadcast %cst_16 : f32 to vector<2x128xf32>
    %58 = arith.addf %57, %56 : vector<2x128xf32>
    %59 = arith.divf %57, %58 : vector<2x128xf32>
    %60 = vector.extract_strided_slice %42 {offsets = [0, 256], sizes = [2, 128], strides = [1, 1]} : vector<2x384xf32> to vector<2x128xf32>
    %61 = vector.extract_strided_slice %43 {offsets = [0, 256], sizes = [2, 128], strides = [1, 1]} : vector<2x384xf32> to vector<2x128xf32>
    %62 = vector.broadcast %8 : vector<1x128xf32> to vector<2x128xf32>
    %63 = arith.addf %61, %62 : vector<2x128xf32>
    %64 = arith.mulf %51, %63 : vector<2x128xf32>
    %65 = arith.addf %60, %64 : vector<2x128xf32>
    %66 = math.tanh %65 : vector<2x128xf32>
    %cst_17 = arith.constant 1.000000e+00 : f32
    %67 = vector.broadcast %cst_17 : f32 to vector<2x128xf32>
    %68 = arith.subf %67, %59 : vector<2x128xf32>
    %69 = arith.mulf %68, %66 : vector<2x128xf32>
    %70 = arith.mulf %59, %40 : vector<2x128xf32>
    %71 = arith.addf %69, %70 : vector<2x128xf32>
    %72 = vector.extract_strided_slice %6 {offsets = [0, 2, 0], sizes = [2, 1, 384], strides = [1, 1, 1]} : vector<2x8x384xf32> to vector<2x1x384xf32>
    %73 = vector.shape_cast %72 : vector<2x1x384xf32> to vector<2x384xf32>
    %cst_18 = arith.constant dense<0.000000e+00> : vector<2x384xf32>
    %74 = tpu.matmul %71, %7, %cst_18 {dimension_numbers = #tpu.dot_dimension_numbers<[1], [0], [0], [1], [0, 0, 1, 1], [], []>} : vector<2x128xf32>, vector<128x384xf32>, vector<2x384xf32> -> vector<2x384xf32>
    %75 = vector.extract_strided_slice %73 {offsets = [0, 0], sizes = [2, 128], strides = [1, 1]} : vector<2x384xf32> to vector<2x128xf32>
    %76 = vector.extract_strided_slice %74 {offsets = [0, 0], sizes = [2, 128], strides = [1, 1]} : vector<2x384xf32> to vector<2x128xf32>
    %77 = arith.addf %75, %76 : vector<2x128xf32>
    %78 = arith.negf %77 : vector<2x128xf32>
    %79 = math.exp %78 : vector<2x128xf32>
    %cst_19 = arith.constant 1.000000e+00 : f32
    %80 = vector.broadcast %cst_19 : f32 to vector<2x128xf32>
    %81 = arith.addf %80, %79 : vector<2x128xf32>
    %82 = arith.divf %80, %81 : vector<2x128xf32>
    %83 = vector.extract_strided_slice %73 {offsets = [0, 128], sizes = [2, 128], strides = [1, 1]} : vector<2x384xf32> to vector<2x128xf32>
    %84 = vector.extract_strided_slice %74 {offsets = [0, 128], sizes = [2, 128], strides = [1, 1]} : vector<2x384xf32> to vector<2x128xf32>
    %85 = arith.addf %83, %84 : vector<2x128xf32>
    %86 = arith.negf %85 : vector<2x128xf32>
    %87 = math.exp %86 : vector<2x128xf32>
    %cst_20 = arith.constant 1.000000e+00 : f32
    %88 = vector.broadcast %cst_20 : f32 to vector<2x128xf32>
    %89 = arith.addf %88, %87 : vector<2x128xf32>
    %90 = arith.divf %88, %89 : vector<2x128xf32>
    %91 = vector.extract_strided_slice %73 {offsets = [0, 256], sizes = [2, 128], strides = [1, 1]} : vector<2x384xf32> to vector<2x128xf32>
    %92 = vector.extract_strided_slice %74 {offsets = [0, 256], sizes = [2, 128], strides = [1, 1]} : vector<2x384xf32> to vector<2x128xf32>
    %93 = vector.broadcast %8 : vector<1x128xf32> to vector<2x128xf32>
    %94 = arith.addf %92, %93 : vector<2x128xf32>
    %95 = arith.mulf %82, %94 : vector<2x128xf32>
    %96 = arith.addf %91, %95 : vector<2x128xf32>
    %97 = math.tanh %96 : vector<2x128xf32>
    %cst_21 = arith.constant 1.000000e+00 : f32
    %98 = vector.broadcast %cst_21 : f32 to vector<2x128xf32>
    %99 = arith.subf %98, %90 : vector<2x128xf32>
    %100 = arith.mulf %99, %97 : vector<2x128xf32>
    %101 = arith.mulf %90, %71 : vector<2x128xf32>
    %102 = arith.addf %100, %101 : vector<2x128xf32>
    %103 = vector.extract_strided_slice %6 {offsets = [0, 3, 0], sizes = [2, 1, 384], strides = [1, 1, 1]} : vector<2x8x384xf32> to vector<2x1x384xf32>
    %104 = vector.shape_cast %103 : vector<2x1x384xf32> to vector<2x384xf32>
    %cst_22 = arith.constant dense<0.000000e+00> : vector<2x384xf32>
    %105 = tpu.matmul %102, %7, %cst_22 {dimension_numbers = #tpu.dot_dimension_numbers<[1], [0], [0], [1], [0, 0, 1, 1], [], []>} : vector<2x128xf32>, vector<128x384xf32>, vector<2x384xf32> -> vector<2x384xf32>
    %106 = vector.extract_strided_slice %104 {offsets = [0, 0], sizes = [2, 128], strides = [1, 1]} : vector<2x384xf32> to vector<2x128xf32>
    %107 = vector.extract_strided_slice %105 {offsets = [0, 0], sizes = [2, 128], strides = [1, 1]} : vector<2x384xf32> to vector<2x128xf32>
    %108 = arith.addf %106, %107 : vector<2x128xf32>
    %109 = arith.negf %108 : vector<2x128xf32>
    %110 = math.exp %109 : vector<2x128xf32>
    %cst_23 = arith.constant 1.000000e+00 : f32
    %111 = vector.broadcast %cst_23 : f32 to vector<2x128xf32>
    %112 = arith.addf %111, %110 : vector<2x128xf32>
    %113 = arith.divf %111, %112 : vector<2x128xf32>
    %114 = vector.extract_strided_slice %104 {offsets = [0, 128], sizes = [2, 128], strides = [1, 1]} : vector<2x384xf32> to vector<2x128xf32>
    %115 = vector.extract_strided_slice %105 {offsets = [0, 128], sizes = [2, 128], strides = [1, 1]} : vector<2x384xf32> to vector<2x128xf32>
    %116 = arith.addf %114, %115 : vector<2x128xf32>
    %117 = arith.negf %116 : vector<2x128xf32>
    %118 = math.exp %117 : vector<2x128xf32>
    %cst_24 = arith.constant 1.000000e+00 : f32
    %119 = vector.broadcast %cst_24 : f32 to vector<2x128xf32>
    %120 = arith.addf %119, %118 : vector<2x128xf32>
    %121 = arith.divf %119, %120 : vector<2x128xf32>
    %122 = vector.extract_strided_slice %104 {offsets = [0, 256], sizes = [2, 128], strides = [1, 1]} : vector<2x384xf32> to vector<2x128xf32>
    %123 = vector.extract_strided_slice %105 {offsets = [0, 256], sizes = [2, 128], strides = [1, 1]} : vector<2x384xf32> to vector<2x128xf32>
    %124 = vector.broadcast %8 : vector<1x128xf32> to vector<2x128xf32>
    %125 = arith.addf %123, %124 : vector<2x128xf32>
    %126 = arith.mulf %113, %125 : vector<2x128xf32>
    %127 = arith.addf %122, %126 : vector<2x128xf32>
    %128 = math.tanh %127 : vector<2x128xf32>
    %cst_25 = arith.constant 1.000000e+00 : f32
    %129 = vector.broadcast %cst_25 : f32 to vector<2x128xf32>
    %130 = arith.subf %129, %121 : vector<2x128xf32>
    %131 = arith.mulf %130, %128 : vector<2x128xf32>
    %132 = arith.mulf %121, %102 : vector<2x128xf32>
    %133 = arith.addf %131, %132 : vector<2x128xf32>
    %134 = vector.extract_strided_slice %6 {offsets = [0, 4, 0], sizes = [2, 1, 384], strides = [1, 1, 1]} : vector<2x8x384xf32> to vector<2x1x384xf32>
    %135 = vector.shape_cast %134 : vector<2x1x384xf32> to vector<2x384xf32>
    %cst_26 = arith.constant dense<0.000000e+00> : vector<2x384xf32>
    %136 = tpu.matmul %133, %7, %cst_26 {dimension_numbers = #tpu.dot_dimension_numbers<[1], [0], [0], [1], [0, 0, 1, 1], [], []>} : vector<2x128xf32>, vector<128x384xf32>, vector<2x384xf32> -> vector<2x384xf32>
    %137 = vector.extract_strided_slice %135 {offsets = [0, 0], sizes = [2, 128], strides = [1, 1]} : vector<2x384xf32> to vector<2x128xf32>
    %138 = vector.extract_strided_slice %136 {offsets = [0, 0], sizes = [2, 128], strides = [1, 1]} : vector<2x384xf32> to vector<2x128xf32>
    %139 = arith.addf %137, %138 : vector<2x128xf32>
    %140 = arith.negf %139 : vector<2x128xf32>
    %141 = math.exp %140 : vector<2x128xf32>
    %cst_27 = arith.constant 1.000000e+00 : f32
    %142 = vector.broadcast %cst_27 : f32 to vector<2x128xf32>
    %143 = arith.addf %142, %141 : vector<2x128xf32>
    %144 = arith.divf %142, %143 : vector<2x128xf32>
    %145 = vector.extract_strided_slice %135 {offsets = [0, 128], sizes = [2, 128], strides = [1, 1]} : vector<2x384xf32> to vector<2x128xf32>
    %146 = vector.extract_strided_slice %136 {offsets = [0, 128], sizes = [2, 128], strides = [1, 1]} : vector<2x384xf32> to vector<2x128xf32>
    %147 = arith.addf %145, %146 : vector<2x128xf32>
    %148 = arith.negf %147 : vector<2x128xf32>
    %149 = math.exp %148 : vector<2x128xf32>
    %cst_28 = arith.constant 1.000000e+00 : f32
    %150 = vector.broadcast %cst_28 : f32 to vector<2x128xf32>
    %151 = arith.addf %150, %149 : vector<2x128xf32>
    %152 = arith.divf %150, %151 : vector<2x128xf32>
    %153 = vector.extract_strided_slice %135 {offsets = [0, 256], sizes = [2, 128], strides = [1, 1]} : vector<2x384xf32> to vector<2x128xf32>
    %154 = vector.extract_strided_slice %136 {offsets = [0, 256], sizes = [2, 128], strides = [1, 1]} : vector<2x384xf32> to vector<2x128xf32>
    %155 = vector.broadcast %8 : vector<1x128xf32> to vector<2x128xf32>
    %156 = arith.addf %154, %155 : vector<2x128xf32>
    %157 = arith.mulf %144, %156 : vector<2x128xf32>
    %158 = arith.addf %153, %157 : vector<2x128xf32>
    %159 = math.tanh %158 : vector<2x128xf32>
    %cst_29 = arith.constant 1.000000e+00 : f32
    %160 = vector.broadcast %cst_29 : f32 to vector<2x128xf32>
    %161 = arith.subf %160, %152 : vector<2x128xf32>
    %162 = arith.mulf %161, %159 : vector<2x128xf32>
    %163 = arith.mulf %152, %133 : vector<2x128xf32>
    %164 = arith.addf %162, %163 : vector<2x128xf32>
    %165 = vector.extract_strided_slice %6 {offsets = [0, 5, 0], sizes = [2, 1, 384], strides = [1, 1, 1]} : vector<2x8x384xf32> to vector<2x1x384xf32>
    %166 = vector.shape_cast %165 : vector<2x1x384xf32> to vector<2x384xf32>
    %cst_30 = arith.constant dense<0.000000e+00> : vector<2x384xf32>
    %167 = tpu.matmul %164, %7, %cst_30 {dimension_numbers = #tpu.dot_dimension_numbers<[1], [0], [0], [1], [0, 0, 1, 1], [], []>} : vector<2x128xf32>, vector<128x384xf32>, vector<2x384xf32> -> vector<2x384xf32>
    %168 = vector.extract_strided_slice %166 {offsets = [0, 0], sizes = [2, 128], strides = [1, 1]} : vector<2x384xf32> to vector<2x128xf32>
    %169 = vector.extract_strided_slice %167 {offsets = [0, 0], sizes = [2, 128], strides = [1, 1]} : vector<2x384xf32> to vector<2x128xf32>
    %170 = arith.addf %168, %169 : vector<2x128xf32>
    %171 = arith.negf %170 : vector<2x128xf32>
    %172 = math.exp %171 : vector<2x128xf32>
    %cst_31 = arith.constant 1.000000e+00 : f32
    %173 = vector.broadcast %cst_31 : f32 to vector<2x128xf32>
    %174 = arith.addf %173, %172 : vector<2x128xf32>
    %175 = arith.divf %173, %174 : vector<2x128xf32>
    %176 = vector.extract_strided_slice %166 {offsets = [0, 128], sizes = [2, 128], strides = [1, 1]} : vector<2x384xf32> to vector<2x128xf32>
    %177 = vector.extract_strided_slice %167 {offsets = [0, 128], sizes = [2, 128], strides = [1, 1]} : vector<2x384xf32> to vector<2x128xf32>
    %178 = arith.addf %176, %177 : vector<2x128xf32>
    %179 = arith.negf %178 : vector<2x128xf32>
    %180 = math.exp %179 : vector<2x128xf32>
    %cst_32 = arith.constant 1.000000e+00 : f32
    %181 = vector.broadcast %cst_32 : f32 to vector<2x128xf32>
    %182 = arith.addf %181, %180 : vector<2x128xf32>
    %183 = arith.divf %181, %182 : vector<2x128xf32>
    %184 = vector.extract_strided_slice %166 {offsets = [0, 256], sizes = [2, 128], strides = [1, 1]} : vector<2x384xf32> to vector<2x128xf32>
    %185 = vector.extract_strided_slice %167 {offsets = [0, 256], sizes = [2, 128], strides = [1, 1]} : vector<2x384xf32> to vector<2x128xf32>
    %186 = vector.broadcast %8 : vector<1x128xf32> to vector<2x128xf32>
    %187 = arith.addf %185, %186 : vector<2x128xf32>
    %188 = arith.mulf %175, %187 : vector<2x128xf32>
    %189 = arith.addf %184, %188 : vector<2x128xf32>
    %190 = math.tanh %189 : vector<2x128xf32>
    %cst_33 = arith.constant 1.000000e+00 : f32
    %191 = vector.broadcast %cst_33 : f32 to vector<2x128xf32>
    %192 = arith.subf %191, %183 : vector<2x128xf32>
    %193 = arith.mulf %192, %190 : vector<2x128xf32>
    %194 = arith.mulf %183, %164 : vector<2x128xf32>
    %195 = arith.addf %193, %194 : vector<2x128xf32>
    %196 = vector.extract_strided_slice %6 {offsets = [0, 6, 0], sizes = [2, 1, 384], strides = [1, 1, 1]} : vector<2x8x384xf32> to vector<2x1x384xf32>
    %197 = vector.shape_cast %196 : vector<2x1x384xf32> to vector<2x384xf32>
    %cst_34 = arith.constant dense<0.000000e+00> : vector<2x384xf32>
    %198 = tpu.matmul %195, %7, %cst_34 {dimension_numbers = #tpu.dot_dimension_numbers<[1], [0], [0], [1], [0, 0, 1, 1], [], []>} : vector<2x128xf32>, vector<128x384xf32>, vector<2x384xf32> -> vector<2x384xf32>
    %199 = vector.extract_strided_slice %197 {offsets = [0, 0], sizes = [2, 128], strides = [1, 1]} : vector<2x384xf32> to vector<2x128xf32>
    %200 = vector.extract_strided_slice %198 {offsets = [0, 0], sizes = [2, 128], strides = [1, 1]} : vector<2x384xf32> to vector<2x128xf32>
    %201 = arith.addf %199, %200 : vector<2x128xf32>
    %202 = arith.negf %201 : vector<2x128xf32>
    %203 = math.exp %202 : vector<2x128xf32>
    %cst_35 = arith.constant 1.000000e+00 : f32
    %204 = vector.broadcast %cst_35 : f32 to vector<2x128xf32>
    %205 = arith.addf %204, %203 : vector<2x128xf32>
    %206 = arith.divf %204, %205 : vector<2x128xf32>
    %207 = vector.extract_strided_slice %197 {offsets = [0, 128], sizes = [2, 128], strides = [1, 1]} : vector<2x384xf32> to vector<2x128xf32>
    %208 = vector.extract_strided_slice %198 {offsets = [0, 128], sizes = [2, 128], strides = [1, 1]} : vector<2x384xf32> to vector<2x128xf32>
    %209 = arith.addf %207, %208 : vector<2x128xf32>
    %210 = arith.negf %209 : vector<2x128xf32>
    %211 = math.exp %210 : vector<2x128xf32>
    %cst_36 = arith.constant 1.000000e+00 : f32
    %212 = vector.broadcast %cst_36 : f32 to vector<2x128xf32>
    %213 = arith.addf %212, %211 : vector<2x128xf32>
    %214 = arith.divf %212, %213 : vector<2x128xf32>
    %215 = vector.extract_strided_slice %197 {offsets = [0, 256], sizes = [2, 128], strides = [1, 1]} : vector<2x384xf32> to vector<2x128xf32>
    %216 = vector.extract_strided_slice %198 {offsets = [0, 256], sizes = [2, 128], strides = [1, 1]} : vector<2x384xf32> to vector<2x128xf32>
    %217 = vector.broadcast %8 : vector<1x128xf32> to vector<2x128xf32>
    %218 = arith.addf %216, %217 : vector<2x128xf32>
    %219 = arith.mulf %206, %218 : vector<2x128xf32>
    %220 = arith.addf %215, %219 : vector<2x128xf32>
    %221 = math.tanh %220 : vector<2x128xf32>
    %cst_37 = arith.constant 1.000000e+00 : f32
    %222 = vector.broadcast %cst_37 : f32 to vector<2x128xf32>
    %223 = arith.subf %222, %214 : vector<2x128xf32>
    %224 = arith.mulf %223, %221 : vector<2x128xf32>
    %225 = arith.mulf %214, %195 : vector<2x128xf32>
    %226 = arith.addf %224, %225 : vector<2x128xf32>
    %227 = vector.extract_strided_slice %6 {offsets = [0, 7, 0], sizes = [2, 1, 384], strides = [1, 1, 1]} : vector<2x8x384xf32> to vector<2x1x384xf32>
    %228 = vector.shape_cast %227 : vector<2x1x384xf32> to vector<2x384xf32>
    %cst_38 = arith.constant dense<0.000000e+00> : vector<2x384xf32>
    %229 = tpu.matmul %226, %7, %cst_38 {dimension_numbers = #tpu.dot_dimension_numbers<[1], [0], [0], [1], [0, 0, 1, 1], [], []>} : vector<2x128xf32>, vector<128x384xf32>, vector<2x384xf32> -> vector<2x384xf32>
    %230 = vector.extract_strided_slice %228 {offsets = [0, 0], sizes = [2, 128], strides = [1, 1]} : vector<2x384xf32> to vector<2x128xf32>
    %231 = vector.extract_strided_slice %229 {offsets = [0, 0], sizes = [2, 128], strides = [1, 1]} : vector<2x384xf32> to vector<2x128xf32>
    %232 = arith.addf %230, %231 : vector<2x128xf32>
    %233 = arith.negf %232 : vector<2x128xf32>
    %234 = math.exp %233 : vector<2x128xf32>
    %cst_39 = arith.constant 1.000000e+00 : f32
    %235 = vector.broadcast %cst_39 : f32 to vector<2x128xf32>
    %236 = arith.addf %235, %234 : vector<2x128xf32>
    %237 = arith.divf %235, %236 : vector<2x128xf32>
    %238 = vector.extract_strided_slice %228 {offsets = [0, 128], sizes = [2, 128], strides = [1, 1]} : vector<2x384xf32> to vector<2x128xf32>
    %239 = vector.extract_strided_slice %229 {offsets = [0, 128], sizes = [2, 128], strides = [1, 1]} : vector<2x384xf32> to vector<2x128xf32>
    %240 = arith.addf %238, %239 : vector<2x128xf32>
    %241 = arith.negf %240 : vector<2x128xf32>
    %242 = math.exp %241 : vector<2x128xf32>
    %cst_40 = arith.constant 1.000000e+00 : f32
    %243 = vector.broadcast %cst_40 : f32 to vector<2x128xf32>
    %244 = arith.addf %243, %242 : vector<2x128xf32>
    %245 = arith.divf %243, %244 : vector<2x128xf32>
    %246 = vector.extract_strided_slice %228 {offsets = [0, 256], sizes = [2, 128], strides = [1, 1]} : vector<2x384xf32> to vector<2x128xf32>
    %247 = vector.extract_strided_slice %229 {offsets = [0, 256], sizes = [2, 128], strides = [1, 1]} : vector<2x384xf32> to vector<2x128xf32>
    %248 = vector.broadcast %8 : vector<1x128xf32> to vector<2x128xf32>
    %249 = arith.addf %247, %248 : vector<2x128xf32>
    %250 = arith.mulf %237, %249 : vector<2x128xf32>
    %251 = arith.addf %246, %250 : vector<2x128xf32>
    %252 = math.tanh %251 : vector<2x128xf32>
    %cst_41 = arith.constant 1.000000e+00 : f32
    %253 = vector.broadcast %cst_41 : f32 to vector<2x128xf32>
    %254 = arith.subf %253, %245 : vector<2x128xf32>
    %255 = arith.mulf %254, %252 : vector<2x128xf32>
    %256 = arith.mulf %245, %226 : vector<2x128xf32>
    %257 = arith.addf %255, %256 : vector<2x128xf32>
    %c0_42 = arith.constant 0 : index
    %c0_43 = arith.constant 0 : index
    %258 = vector.load %arg1[%c0_42, %c0_43] : memref<2x32xf32, #tpu.memory_space<vmem>>, vector<2x32xf32>
    %c0_44 = arith.constant 0 : index
    %c0_45 = arith.constant 0 : index
    %259 = vector.load %arg6[%c0_44, %c0_45] : memref<32x16xf32, #tpu.memory_space<vmem>>, vector<32x16xf32>
    %cst_46 = arith.constant dense<0.000000e+00> : vector<2x16xf32>
    %260 = tpu.matmul %258, %259, %cst_46 {dimension_numbers = #tpu.dot_dimension_numbers<[1], [0], [0], [1], [0, 0, 1, 1], [], []>} : vector<2x32xf32>, vector<32x16xf32>, vector<2x16xf32> -> vector<2x16xf32>
    %c0_47 = arith.constant 0 : index
    %c0_48 = arith.constant 0 : index
    %261 = vector.load %arg7[%c0_47, %c0_48] : memref<128x16xf32, #tpu.memory_space<vmem>>, vector<128x16xf32>
    %cst_49 = arith.constant dense<0.000000e+00> : vector<2x16xf32>
    %262 = tpu.matmul %257, %261, %cst_49 {dimension_numbers = #tpu.dot_dimension_numbers<[1], [0], [0], [1], [0, 0, 1, 1], [], []>} : vector<2x128xf32>, vector<128x16xf32>, vector<2x16xf32> -> vector<2x16xf32>
    %263 = arith.addf %260, %262 : vector<2x16xf32>
    %c0_50 = arith.constant 0 : index
    %c0_51 = arith.constant 0 : index
    %264 = vector.load %arg8[%c0_50, %c0_51] : memref<1x16xf32, #tpu.memory_space<vmem>>, vector<1x16xf32>
    %265 = vector.broadcast %264 : vector<1x16xf32> to vector<2x16xf32>
    %266 = arith.addf %263, %265 : vector<2x16xf32>
    %c0_52 = arith.constant 0 : index
    %c0_53 = arith.constant 0 : index
    %267 = vector.load %arg9[%c0_52, %c0_53] : memref<2x16xf32, #tpu.memory_space<vmem>>, vector<2x16xf32>
    tpu.vector_store %arg9[%c0_52, %c0_53], %266 {strides = array<i32>} : memref<2x16xf32, #tpu.memory_space<vmem>>, vector<2x16xf32>,
    return
  }
}

</mosaic_0001>

<llo_original>
// kernel: tpu_custom_call.1
$region0: #{tpu_custom_call.1}
  #allocation0 [shape = 'u32[]', space=smem, size = 0x4, offset = 0x4, fixed_abs, tag = 'smem constant byte address 0x4 - core index']
  #allocation1 [shape = 'u32[144,128]{1,0:T(1,128)}', space=vmem, size = 0x12000, scoped, tag = 'internal scratch']
  %s0 = inlined_call_operand.vmem [shape: f32[16,16], index: 0, kind: input, shape index: {}]
  %s1 = inlined_call_operand.vmem [shape: f32[2,32], index: 1, kind: input, shape index: {}]
  %s2 = inlined_call_operand.vmem [shape: f32[16,384], index: 2, kind: input, shape index: {}]
  %s3 = inlined_call_operand.hbm [shape: f32[128,384], index: 3, kind: input, shape index: {}]
  %s4 = inlined_call_operand.vmem [shape: f32[1,384], index: 4, kind: input, shape index: {}]
  %s5 = inlined_call_operand.vmem [shape: f32[1,128], index: 5, kind: input, shape index: {}]
  %s6 = inlined_call_operand.vmem [shape: f32[32,16], index: 6, kind: input, shape index: {}]
  %s7 = inlined_call_operand.vmem [shape: f32[128,16], index: 7, kind: input, shape index: {}]
  %s8 = inlined_call_operand.vmem [shape: f32[1,16], index: 8, kind: input, shape index: {}]
  %s9 = inlined_call_operand.hbm [shape: f32[2,16], index: 9, kind: output, shape index: {}]
  %s10 = sld [smem:[#allocation0]]
  $region50: #{tpu_custom_call.1} parent=0
    _
  %s12 = ssub.s32 1, %s10
  %s13 = scalar_select 0, %s12, %s10
  $region1: #{tpu_custom_call.1} parent=0
    #allocation2 [shape = 'u8[196608]{0}', space=vmem, size = 0x30000, scoped, tag = 'input window, operand 3, single buffered']
    #allocation3 [shape = 's32[1]{0}', space=sflag, size = 0x4, scoped, tag = 'scoped memory for tpu_custom_call.1']
    #allocation4 [shape = 's32[1]{0}', space=sflag, size = 0x4, scoped, tag = 'scoped memory for tpu_custom_call.1']
    #allocation5 [shape = 'u8[1024]{0}', space=vmem, size = 0x400, scoped, tag = 'output window, operand 0, single buffered']
    %14 = vsyncpa [#allocation3], 0
    %15 = vsyncpa [#allocation4], 0
    // Predicated region
    $region2: #{tpu_custom_call.1} parent=1 // pred_check
      _
    $region3: #{tpu_custom_call.1} parent=1 // pred_check_branch
      %17 = sbr.rel (0) target = $region5
    $region4: #{tpu_custom_call.1} parent=1 // pred_region
      _
    $region5: #{tpu_custom_call.1} parent=1 // pred_fallthru
      _
    // Predicated region
    $region6: #{tpu_custom_call.1} parent=1 // pred_check
      _
    $region7: #{tpu_custom_call.1} parent=1 // pred_check_branch
      %19 = sbr.rel (0) target = $region9
    $region8: #{tpu_custom_call.1} parent=1 // pred_region
      _
    $region9: #{tpu_custom_call.1} parent=1 // pred_fallthru
      _
    // Predicated region
    $region10: #{tpu_custom_call.1} parent=1 // pred_check
      _
    $region11: #{tpu_custom_call.1} parent=1 // pred_check_branch
      %21 = sbr.rel (0) target = $region13
    $region12: #{tpu_custom_call.1} parent=1 // pred_region
      _
    $region13: #{tpu_custom_call.1} parent=1 // pred_fallthru
      _
    // Predicated region
    $region14: #{tpu_custom_call.1} parent=1 // pred_check
      _
    $region15: #{tpu_custom_call.1} parent=1 // pred_check_branch
      %23 = sbr.rel (0) target = $region17
    $region16: #{tpu_custom_call.1} parent=1 // pred_region
      %s25 = ssub.s32 6144, 6144
      %26 = vsyncadd [#allocation3], %s25
      %s27 = sshll.u32 [#allocation2], 4
      %s28 = int_to_ptr.vmem [resolvable:$true] %s27
      %33 = dma.hbm_to_vmem [thread:$0]  %s3, 6144, %s28, [#allocation3], 384, 384, 24
    $region17: #{tpu_custom_call.1} parent=1 // pred_fallthru
      _
    // Predicated region
    $region18: #{tpu_custom_call.1} parent=1 // pred_check
      _
    $region19: #{tpu_custom_call.1} parent=1 // pred_check_branch
      %35 = sbr.rel (0) target = $region21
    $region20: #{tpu_custom_call.1} parent=1 // pred_region
      _
    $region21: #{tpu_custom_call.1} parent=1 // pred_fallthru
      _
    // Predicated region
    $region22: #{tpu_custom_call.1} parent=1 // pred_check
      _
    $region23: #{tpu_custom_call.1} parent=1 // pred_check_branch
      %37 = sbr.rel (0) target = $region25
    $region24: #{tpu_custom_call.1} parent=1 // pred_region
      _
    $region25: #{tpu_custom_call.1} parent=1 // pred_fallthru
      _
    // Predicated region
    $region26: #{tpu_custom_call.1} parent=1 // pred_check
      _
    $region27: #{tpu_custom_call.1} parent=1 // pred_check_branch
      %39 = sbr.rel (0) target = $region29
    $region28: #{tpu_custom_call.1} parent=1 // pred_region
      _
    $region29: #{tpu_custom_call.1} parent=1 // pred_fallthru
      _
    // Predicated region
    $region30: #{tpu_custom_call.1} parent=1 // pred_check
      _
    $region31: #{tpu_custom_call.1} parent=1 // pred_check_branch
      %41 = sbr.rel (0) target = $region33
    $region32: #{tpu_custom_call.1} parent=1 // pred_region
      _
    $region33: #{tpu_custom_call.1} parent=1 // pred_fallthru
      _
    // Predicated region
    $region34: #{tpu_custom_call.1} parent=1 // pred_check
      _
    $region35: #{tpu_custom_call.1} parent=1 // pred_check_branch
      %43 = sbr.rel (0) target = $region37
    $region36: #{tpu_custom_call.1} parent=1 // pred_region
      _
    $region37: #{tpu_custom_call.1} parent=1 // pred_fallthru
      _
    // Predicated region
    $region38: #{tpu_custom_call.1} parent=1 // pred_check
      _
    $region39: #{tpu_custom_call.1} parent=1 // pred_check_branch
      %45 = sbr.rel (0) target = $region41
    $region40: #{tpu_custom_call.1} parent=1 // pred_region
      %46 = dma.done [#allocation3], 6144
    $region41: #{tpu_custom_call.1} parent=1 // pred_fallthru
      _
    %v47 = vld [vmem:[%s0] sm:$0xff]
    %v48 = vld [vmem:[%s0 + $0x8] sm:$0xff]
    %v49 = vld [vmem:[%s2] sm:$0xff]
    %v50 = vld [vmem:[%s2 + $0x8] sm:$0xff]
    %v51 = vld [vmem:[%s2 + $0x10] sm:$0xff]
    %v52 = vld [vmem:[%s2 + $0x18] sm:$0xff]
    %v53 = vld [vmem:[%s2 + $0x20] sm:$0xff]
    %v54 = vld [vmem:[%s2 + $0x28] sm:$0xff]
    %v55 = vld [vmem:[%s4] sm:$0x7]
    %v57 = vlaneseq
    %v58 = vshrl.u32 %v57, 7
    %v59 = vsub.s32 0, %v58
    %v60 = vrot.slane %v55, %v59
    %v61 = vlaneseq
    %v62 = vshrl.u32 %v61, 7
    %v63 = vsub.s32 1, %v62
    %v64 = vrot.slane %v55, %v63
    %v65 = vlaneseq
    %v66 = vshrl.u32 %v65, 7
    %v67 = vsub.s32 2, %v66
    %v68 = vrot.slane %v55, %v67
    %vm72 = vcmask 130048
    %v74 = vsel %vm72, %v47, 0
    %v77 = vsel %vm72, %v48, 0
    %79 = vmatprep.subr.mxu0 %v50
    %80 = vmatpush1.msra.mxu0 %v49
    %81 = vmatprep.subr.mxu0 %v53
    %82 = vmatpush1.msra.mxu0 %v52
    %83 = vmatprep.subr.mxu0 0.0
    %84 = vmatpush1.msra.mxu0 0.0
    %85 = vmatprep.subr.mxu0 0.0
    %86 = vmatpush1.msra.mxu0 0.0
    %87 = vmatprep.subr.mxu0 0.0
    %88 = vmatpush1.msra.mxu0 0.0
    %89 = vmatprep.subr.mxu0 0.0
    %90 = vmatpush1.msra.mxu0 0.0
    %91 = vmatprep.subr.mxu0 0.0
    %92 = vmatpush1.msra.mxu0 0.0
    %93 = vmatprep.subr.mxu0 0.0
    %94 = vmatpush1.msra.mxu0 0.0
    %95 = vmatprep.subr.mxu0 0.0
    %96 = vmatpush1.msra.mxu0 0.0
    %97 = vmatprep.subr.mxu0 0.0
    %98 = vmatpush1.msra.mxu0 0.0
    %99 = vmatprep.subr.mxu0 0.0
    %100 = vmatpush1.msra.mxu0 0.0
    %101 = vmatprep.subr.mxu0 0.0
    %102 = vmatpush1.msra.mxu0 0.0
    %103 = vmatprep.subr.mxu0 0.0
    %104 = vmatpush1.msra.mxu0 0.0
    %105 = vmatprep.subr.mxu0 0.0
    %106 = vmatpush1.msra.mxu0 0.0
    %107 = vmatprep.subr.mxu0 0.0
    %108 = vmatpush1.msra.mxu0 0.0
    %109 = vmatprep.subr.mxu0 0.0
    %110 = vmatpush1.msra.mxu0 0.0
    %111 = vmatprep.subr.mxu0 0.0
    %112 = vmatpush1.msra.mxu0 0.0
    %113 = vmatprep.subr.mxu0 0.0
    %114 = vmatpush1.msra.mxu0 0.0
    %115 = vmatprep.subr.mxu0 0.0
    %116 = vmatpush1.msra.mxu0 0.0
    %117 = vmatprep.subr.mxu0 0.0
    %118 = vmatpush1.msra.mxu0 0.0
    %119 = vmatprep.subr.mxu0 0.0
    %120 = vmatpush1.msra.mxu0 0.0
    %121 = vmatprep.subr.mxu0 0.0
    %122 = vmatpush1.msra.mxu0 0.0
    %123 = vmatprep.subr.mxu0 0.0
    %124 = vmatpush1.msra.mxu0 0.0
    %125 = vmatprep.subr.mxu0 0.0
    %126 = vmatpush1.msra.mxu0 0.0
    %127 = vmatprep.subr.mxu0 0.0
    %128 = vmatpush1.msra.mxu0 0.0
    %129 = vmatprep.subr.mxu0 0.0
    %130 = vmatpush1.msra.mxu0 0.0
    %131 = vmatprep.subr.mxu0 0.0
    %132 = vmatpush1.msra.mxu0 0.0
    %133 = vmatprep.subr.mxu0 0.0
    %134 = vmatpush1.msra.mxu0 0.0
    %135 = vmatprep.subr.mxu0 0.0
    %136 = vmatpush1.msra.mxu0 0.0
    %137 = vmatprep.subr.mxu0 0.0
    %138 = vmatpush1.msra.mxu0 0.0
    %139 = vmatprep.subr.mxu0 0.0
    %140 = vmatpush1.msra.mxu0 0.0
    %141 = vmatprep.subr.mxu0 0.0
    %142 = vmatpush1.msra.mxu0 0.0
    %143 = vmatprep.mubr.f32.mxu0 0.0
    %144 = vmatmul.mubr.f32.gmra.mrb[0].mxu0 %v74
    %v145 = vpop.f32.mrb[0].mxu0
    %v146 = vadd.f32 %v60, %v145
    %v147 = vpop.f32.mrb[0].mxu0
    %v148 = vadd.f32 %v64, %v147
    %149 = vmatprep.mubr.f32.mxu0 0.0
    %150 = vmatmul.mubr.f32.gmra.mrb[0].mxu0 %v77
    %v151 = vpop.f32.mrb[0].mxu0
    %v152 = vadd.f32 %v60, %v151
    %v153 = vpop.f32.mrb[0].mxu0
    %v154 = vadd.f32 %v64, %v153
    %155 = vdwg.mxu0
    %156 = vmatprep.subr.mxu0 0.0
    %157 = vmatpush1.msra.mxu0 %v51
    %158 = vmatprep.subr.mxu0 0.0
    %159 = vmatpush1.msra.mxu0 %v54
    %160 = vmatprep.subr.mxu0 0.0
    %161 = vmatpush1.msra.mxu0 0.0
    %162 = vmatprep.subr.mxu0 0.0
    %163 = vmatpush1.msra.mxu0 0.0
    %164 = vmatprep.subr.mxu0 0.0
    %165 = vmatpush1.msra.mxu0 0.0
    %166 = vmatprep.subr.mxu0 0.0
    %167 = vmatpush1.msra.mxu0 0.0
    %168 = vmatprep.subr.mxu0 0.0
    %169 = vmatpush1.msra.mxu0 0.0
    %170 = vmatprep.subr.mxu0 0.0
    %171 = vmatpush1.msra.mxu0 0.0
    %172 = vmatprep.subr.mxu0 0.0
    %173 = vmatpush1.msra.mxu0 0.0
    %174 = vmatprep.subr.mxu0 0.0
    %175 = vmatpush1.msra.mxu0 0.0
    %176 = vmatprep.subr.mxu0 0.0
    %177 = vmatpush1.msra.mxu0 0.0
    %178 = vmatprep.subr.mxu0 0.0
    %179 = vmatpush1.msra.mxu0 0.0
    %180 = vmatprep.subr.mxu0 0.0
    %181 = vmatpush1.msra.mxu0 0.0
    %182 = vmatprep.subr.mxu0 0.0
    %183 = vmatpush1.msra.mxu0 0.0
    %184 = vmatprep.subr.mxu0 0.0
    %185 = vmatpush1.msra.mxu0 0.0
    %186 = vmatprep.subr.mxu0 0.0
    %187 = vmatpush1.msra.mxu0 0.0
    %188 = vmatprep.subr.mxu0 0.0
    %189 = vmatpush1.msra.mxu0 0.0
    %190 = vmatprep.subr.mxu0 0.0
    %191 = vmatpush1.msra.mxu0 0.0
    %192 = vmatprep.subr.mxu0 0.0
    %193 = vmatpush1.msra.mxu0 0.0
    %194 = vmatprep.subr.mxu0 0.0
    %195 = vmatpush1.msra.mxu0 0.0
    %196 = vmatprep.subr.mxu0 0.0
    %197 = vmatpush1.msra.mxu0 0.0
    %198 = vmatprep.subr.mxu0 0.0
    %199 = vmatpush1.msra.mxu0 0.0
    %200 = vmatprep.subr.mxu0 0.0
    %201 = vmatpush1.msra.mxu0 0.0
    %202 = vmatprep.subr.mxu0 0.0
    %203 = vmatpush1.msra.mxu0 0.0
    %204 = vmatprep.subr.mxu0 0.0
    %205 = vmatpush1.msra.mxu0 0.0
    %206 = vmatprep.subr.mxu0 0.0
    %207 = vmatpush1.msra.mxu0 0.0
    %208 = vmatprep.subr.mxu0 0.0
    %209 = vmatpush1.msra.mxu0 0.0
    %210 = vmatprep.subr.mxu0 0.0
    %211 = vmatpush1.msra.mxu0 0.0
    %212 = vmatprep.subr.mxu0 0.0
    %213 = vmatpush1.msra.mxu0 0.0
    %214 = vmatprep.subr.mxu0 0.0
    %215 = vmatpush1.msra.mxu0 0.0
    %216 = vmatprep.subr.mxu0 0.0
    %217 = vmatpush1.msra.mxu0 0.0
    %218 = vmatprep.subr.mxu0 0.0
    %219 = vmatpush1.msra.mxu0 0.0
    %220 = vmatprep.mubr.f32.mxu0 0.0
    %221 = vmatmul.mubr.f32.gmra.mrb[0].mxu0 %v74
    %v222 = vpop.f32.mrb[0].mxu0
    %v223 = vadd.f32 %v68, %v222
    %v224 = vpop.f32.mrb[0].mxu0
    %225 = vmatprep.mubr.f32.mxu0 0.0
    %226 = vmatmul.mubr.f32.gmra.mrb[0].mxu0 %v77
    %v227 = vpop.f32.mrb[0].mxu0
    %v228 = vadd.f32 %v68, %v227
    %v229 = vpop.f32.mrb[0].mxu0
    %230 = vdwg.mxu0
    %v231 = vld [vmem:[#allocation2] sm:$0xff]
    %v232 = vld [vmem:[#allocation2 + $0x8] sm:$0xff]
    %v233 = vld [vmem:[#allocation2 + $0x10] sm:$0xff]
    %v234 = vld [vmem:[#allocation2 + $0x18] sm:$0xff]
    %v235 = vld [vmem:[#allocation2 + $0x20] sm:$0xff]
    %v236 = vld [vmem:[#allocation2 + $0x28] sm:$0xff]
    %v237 = vld [vmem:[#allocation2 + $0x30] sm:$0xff]
    %v238 = vld [vmem:[#allocation2 + $0x38] sm:$0xff]
    %v239 = vld [vmem:[#allocation2 + $0x40] sm:$0xff]
    %v240 = vld [vmem:[#allocation2 + $0x48] sm:$0xff]
    %v241 = vld [vmem:[#allocation2 + $0x50] sm:$0xff]
    %v242 = vld [vmem:[#allocation2 + $0x58] sm:$0xff]
    %v243 = vld [vmem:[#allocation2 + $0x60] sm:$0xff]
    %v244 = vld [vmem:[#allocation2 + $0x68] sm:$0xff]
    %v245 = vld [vmem:[#allocation2 + $0x70] sm:$0xff]
    %v246 = vld [vmem:[#allocation2 + $0x78] sm:$0xff]
    %v247 = vld [vmem:[#allocation2 + $0x80] sm:$0xff]
    %v248 = vld [vmem:[#allocation2 + $0x88] sm:$0xff]
    %v249 = vld [vmem:[#allocation2 + $0x90] sm:$0xff]
    %v250 = vld [vmem:[#allocation2 + $0x98] sm:$0xff]
    %v251 = vld [vmem:[#allocation2 + $0xa0] sm:$0xff]
    %v252 = vld [vmem:[#allocation2 + $0xa8] sm:$0xff]
    %v253 = vld [vmem:[#allocation2 + $0xb0] sm:$0xff]
    %v254 = vld [vmem:[#allocation2 + $0xb8] sm:$0xff]
    %v255 = vld [vmem:[#allocation2 + $0xc0] sm:$0xff]
    %v256 = vld [vmem:[#allocation2 + $0xc8] sm:$0xff]
    %v257 = vld [vmem:[#allocation2 + $0xd0] sm:$0xff]
    %v258 = vld [vmem:[#allocation2 + $0xd8] sm:$0xff]
    %v259 = vld [vmem:[#allocation2 + $0xe0] sm:$0xff]
    %v260 = vld [vmem:[#allocation2 + $0xe8] sm:$0xff]
    %v261 = vld [vmem:[#allocation2 + $0xf0] sm:$0xff]
    %v262 = vld [vmem:[#allocation2 + $0xf8] sm:$0xff]
    %v263 = vld [vmem:[#allocation2 + $0x100] sm:$0xff]
    %v264 = vld [vmem:[#allocation2 + $0x108] sm:$0xff]
    %v265 = vld [vmem:[#allocation2 + $0x110] sm:$0xff]
    %v266 = vld [vmem:[#allocation2 + $0x118] sm:$0xff]
    %v267 = vld [vmem:[#allocation2 + $0x120] sm:$0xff]
    %v268 = vld [vmem:[#allocation2 + $0x128] sm:$0xff]
    %v269 = vld [vmem:[#allocation2 + $0x130] sm:$0xff]
    %v270 = vld [vmem:[#allocation2 + $0x138] sm:$0xff]
    %v271 = vld [vmem:[#allocation2 + $0x140] sm:$0xff]
    %v272 = vld [vmem:[#allocation2 + $0x148] sm:$0xff]
    %v273 = vld [vmem:[#allocation2 + $0x150] sm:$0xff]
    %v274 = vld [vmem:[#allocation2 + $0x158] sm:$0xff]
    %v275 = vld [vmem:[#allocation2 + $0x160] sm:$0xff]
    %v276 = vld [vmem:[#allocation2 + $0x168] sm:$0xff]
    %v277 = vld [vmem:[#allocation2 + $0x170] sm:$0xff]
    %v278 = vld [vmem:[#allocation2 + $0x178] sm:$0xff]
    %v279 = vld [vmem:[%s5] sm:$0x1]
    %280 = vmatprep.subr.mxu0 %v232
    %281 = vmatpush1.msra.mxu0 %v231
    %282 = vmatprep.subr.mxu0 %v235
    %283 = vmatpush1.msra.mxu0 %v234
    %284 = vmatprep.subr.mxu0 %v238
    %285 = vmatpush1.msra.mxu0 %v237
    %286 = vmatprep.subr.mxu0 %v241
    %287 = vmatpush1.msra.mxu0 %v240
    %288 = vmatprep.subr.mxu0 %v244
    %289 = vmatpush1.msra.mxu0 %v243
    %290 = vmatprep.subr.mxu0 %v247
    %291 = vmatpush1.msra.mxu0 %v246
    %292 = vmatprep.subr.mxu0 %v250
    %293 = vmatpush1.msra.mxu0 %v249
    %294 = vmatprep.subr.mxu0 %v253
    %295 = vmatpush1.msra.mxu0 %v252
    %296 = vmatprep.subr.mxu0 %v256
    %297 = vmatpush1.msra.mxu0 %v255
    %298 = vmatprep.subr.mxu0 %v259
    %299 = vmatpush1.msra.mxu0 %v258
    %300 = vmatprep.subr.mxu0 %v262
    %301 = vmatpush1.msra.mxu0 %v261
    %302 = vmatprep.subr.mxu0 %v265
    %303 = vmatpush1.msra.mxu0 %v264
    %304 = vmatprep.subr.mxu0 %v268
    %305 = vmatpush1.msra.mxu0 %v267
    %306 = vmatprep.subr.mxu0 %v271
    %307 = vmatpush1.msra.mxu0 %v270
    %308 = vmatprep.subr.mxu0 %v274
    %309 = vmatpush1.msra.mxu0 %v273
    %310 = vmatprep.subr.mxu0 %v277
    %311 = vmatpush1.msra.mxu0 %v276
    %312 = vmatprep.subr.mxu0 0.0
    %313 = vmatpush1.msra.mxu0 0.0
    %314 = vmatprep.subr.mxu0 0.0
    %315 = vmatpush1.msra.mxu0 0.0
    %316 = vmatprep.subr.mxu0 0.0
    %317 = vmatpush1.msra.mxu0 0.0
    %318 = vmatprep.subr.mxu0 0.0
    %319 = vmatpush1.msra.mxu0 0.0
    %320 = vmatprep.subr.mxu0 0.0
    %321 = vmatpush1.msra.mxu0 0.0
    %322 = vmatprep.subr.mxu0 0.0
    %323 = vmatpush1.msra.mxu0 0.0
    %324 = vmatprep.subr.mxu0 0.0
    %325 = vmatpush1.msra.mxu0 0.0
    %326 = vmatprep.subr.mxu0 0.0
    %327 = vmatpush1.msra.mxu0 0.0
    %328 = vmatprep.subr.mxu0 0.0
    %329 = vmatpush1.msra.mxu0 0.0
    %330 = vmatprep.subr.mxu0 0.0
    %331 = vmatpush1.msra.mxu0 0.0
    %332 = vmatprep.subr.mxu0 0.0
    %333 = vmatpush1.msra.mxu0 0.0
    %334 = vmatprep.subr.mxu0 0.0
    %335 = vmatpush1.msra.mxu0 0.0
    %336 = vmatprep.subr.mxu0 0.0
    %337 = vmatpush1.msra.mxu0 0.0
    %338 = vmatprep.subr.mxu0 0.0
    %339 = vmatpush1.msra.mxu0 0.0
    %340 = vmatprep.subr.mxu0 0.0
    %341 = vmatpush1.msra.mxu0 0.0
    %342 = vmatprep.subr.mxu0 0.0
    %343 = vmatpush1.msra.mxu0 0.0
    %344 = vmatprep.mubr.f32.mxu0 0.0
    %345 = vmatmul.mubr.f32.gmra.mrb[0].mxu0 0.0
    %v346 = vpop.f32.mrb[0].mxu0
    %v347 = vadd.f32 0.0, %v346
    %v348 = vpop.f32.mrb[0].mxu0
    %v349 = vadd.f32 0.0, %v348
    %350 = vdwg.mxu0
    %351 = vmatprep.subr.mxu0 0.0
    %352 = vmatpush1.msra.mxu0 %v233
    %353 = vmatprep.subr.mxu0 0.0
    %354 = vmatpush1.msra.mxu0 %v236
    %355 = vmatprep.subr.mxu0 0.0
    %356 = vmatpush1.msra.mxu0 %v239
    %357 = vmatprep.subr.mxu0 0.0
    %358 = vmatpush1.msra.mxu0 %v242
    %359 = vmatprep.subr.mxu0 0.0
    %360 = vmatpush1.msra.mxu0 %v245
    %361 = vmatprep.subr.mxu0 0.0
    %362 = vmatpush1.msra.mxu0 %v248
    %363 = vmatprep.subr.mxu0 0.0
    %364 = vmatpush1.msra.mxu0 %v251
    %365 = vmatprep.subr.mxu0 0.0
    %366 = vmatpush1.msra.mxu0 %v254
    %367 = vmatprep.subr.mxu0 0.0
    %368 = vmatpush1.msra.mxu0 %v257
    %369 = vmatprep.subr.mxu0 0.0
    %370 = vmatpush1.msra.mxu0 %v260
    %371 = vmatprep.subr.mxu0 0.0
    %372 = vmatpush1.msra.mxu0 %v263
    %373 = vmatprep.subr.mxu0 0.0
    %374 = vmatpush1.msra.mxu0 %v266
    %375 = vmatprep.subr.mxu0 0.0
    %376 = vmatpush1.msra.mxu0 %v269
    %377 = vmatprep.subr.mxu0 0.0
    %378 = vmatpush1.msra.mxu0 %v272
    %379 = vmatprep.subr.mxu0 0.0
    %380 = vmatpush1.msra.mxu0 %v275
    %381 = vmatprep.subr.mxu0 0.0
    %382 = vmatpush1.msra.mxu0 %v278
    %383 = vmatprep.subr.mxu0 0.0
    %384 = vmatpush1.msra.mxu0 0.0
    %385 = vmatprep.subr.mxu0 0.0
    %386 = vmatpush1.msra.mxu0 0.0
    %387 = vmatprep.subr.mxu0 0.0
    %388 = vmatpush1.msra.mxu0 0.0
    %389 = vmatprep.subr.mxu0 0.0
    %390 = vmatpush1.msra.mxu0 0.0
    %391 = vmatprep.subr.mxu0 0.0
    %392 = vmatpush1.msra.mxu0 0.0
    %393 = vmatprep.subr.mxu0 0.0
    %394 = vmatpush1.msra.mxu0 0.0
    %395 = vmatprep.subr.mxu0 0.0
    %396 = vmatpush1.msra.mxu0 0.0
    %397 = vmatprep.subr.mxu0 0.0
    %398 = vmatpush1.msra.mxu0 0.0
    %399 = vmatprep.subr.mxu0 0.0
    %400 = vmatpush1.msra.mxu0 0.0
    %401 = vmatprep.subr.mxu0 0.0
    %402 = vmatpush1.msra.mxu0 0.0
    %403 = vmatprep.subr.mxu0 0.0
    %404 = vmatpush1.msra.mxu0 0.0
    %405 = vmatprep.subr.mxu0 0.0
    %406 = vmatpush1.msra.mxu0 0.0
    %407 = vmatprep.subr.mxu0 0.0
    %408 = vmatpush1.msra.mxu0 0.0
    %409 = vmatprep.subr.mxu0 0.0
    %410 = vmatpush1.msra.mxu0 0.0
    %411 = vmatprep.subr.mxu0 0.0
    %412 = vmatpush1.msra.mxu0 0.0
    %413 = vmatprep.subr.mxu0 0.0
    %414 = vmatpush1.msra.mxu0 0.0
    %415 = vmatprep.mubr.f32.mxu0 0.0
    %416 = vmatmul.mubr.f32.gmra.mrb[0].mxu0 0.0
    %v417 = vpop.f32.mrb[0].mxu0
    %v418 = vadd.f32 0.0, %v417
    %v419 = vpop.f32.mrb[0].mxu0
    %420 = vdwg.mxu0
    %v422 = vrot.slane %v347, 1
    %v425 = vadd.f32 %v146, %v347
    %v426 = vadd.f32 %v152, %v422
    %v427 = vxor.u32 %v425, 2147483648
    %v428 = vxor.u32 %v426, 2147483648
    %v429 = vmul.f32 %v427, 1.442695
    %v430 = vpow.pop %v429
    %v431 = vmul.f32 %v428, 1.442695
    %v432 = vpow.pop %v431
    %v433 = vadd.f32 %v430, 1.0
    %v434 = vadd.f32 %v432, 1.0
    %v435 = vrcp.pop %v433
    %v436 = vmul.f32 1.0, %v435
    %v437 = vrcp.pop %v434
    %v438 = vmul.f32 1.0, %v437
    %v440 = vrot.slane %v349, 1
    %v443 = vadd.f32 %v148, %v349
    %v444 = vadd.f32 %v154, %v440
    %v445 = vxor.u32 %v443, 2147483648
    %v446 = vxor.u32 %v444, 2147483648
    %v447 = vmul.f32 %v445, 1.442695
    %v448 = vpow.pop %v447
    %v449 = vmul.f32 %v446, 1.442695
    %v450 = vpow.pop %v449
    %v451 = vadd.f32 %v448, 1.0
    %v452 = vadd.f32 %v450, 1.0
    %v453 = vrcp.pop %v451
    %v454 = vmul.f32 1.0, %v453
    %v455 = vrcp.pop %v452
    %v456 = vmul.f32 1.0, %v455
    %v458 = vlaneseq
    %v459 = vshrl.u32 %v458, 7
    %v460 = vsub.s32 0, %v459
    %v461 = vrot.slane %v279, %v460
    %v463 = vadd.f32 %v418, %v461
    %v465 = vrot.slane %v463, 1
    %v468 = vmul.f32 %v436, %v463
    %v469 = vmul.f32 %v438, %v465
    %v470 = vadd.f32 %v223, %v468
    %v471 = vadd.f32 %v228, %v469
    %v472 = vtanh.pop %v470
    %v473 = vtanh.pop %v471
    %v474 = vsub.f32 1.0, %v454
    %v475 = vsub.f32 1.0, %v456
    %v476 = vmul.f32 %v474, %v472
    %v477 = vmul.f32 %v475, %v473
    %v478 = vmul.f32 %v454, 0.0
    %v479 = vmul.f32 %v456, 0.0
    %v480 = vadd.f32 %v476, %v478
    %v481 = vadd.f32 %v477, %v479
    %v484 = vrot.slane %v481, 7
    %vm485 = vcmask 1041409
    %v486 = vsel %vm485, %v484, %v480
    %488 = vmatprep.subr.mxu0 %v232
    %489 = vmatpush1.msra.mxu0 %v231
    %490 = vmatprep.subr.mxu0 %v235
    %491 = vmatpush1.msra.mxu0 %v234
    %492 = vmatprep.subr.mxu0 %v238
    %493 = vmatpush1.msra.mxu0 %v237
    %494 = vmatprep.subr.mxu0 %v241
    %495 = vmatpush1.msra.mxu0 %v240
    %496 = vmatprep.subr.mxu0 %v244
    %497 = vmatpush1.msra.mxu0 %v243
    %498 = vmatprep.subr.mxu0 %v247
    %499 = vmatpush1.msra.mxu0 %v246
    %500 = vmatprep.subr.mxu0 %v250
    %501 = vmatpush1.msra.mxu0 %v249
    %502 = vmatprep.subr.mxu0 %v253
    %503 = vmatpush1.msra.mxu0 %v252
    %504 = vmatprep.subr.mxu0 %v256
    %505 = vmatpush1.msra.mxu0 %v255
    %506 = vmatprep.subr.mxu0 %v259
    %507 = vmatpush1.msra.mxu0 %v258
    %508 = vmatprep.subr.mxu0 %v262
    %509 = vmatpush1.msra.mxu0 %v261
    %510 = vmatprep.subr.mxu0 %v265
    %511 = vmatpush1.msra.mxu0 %v264
    %512 = vmatprep.subr.mxu0 %v268
    %513 = vmatpush1.msra.mxu0 %v267
    %514 = vmatprep.subr.mxu0 %v271
    %515 = vmatpush1.msra.mxu0 %v270
    %516 = vmatprep.subr.mxu0 %v274
    %517 = vmatpush1.msra.mxu0 %v273
    %518 = vmatprep.subr.mxu0 %v277
    %519 = vmatpush1.msra.mxu0 %v276
    %520 = vmatprep.subr.mxu0 0.0
    %521 = vmatpush1.msra.mxu0 0.0
    %522 = vmatprep.subr.mxu0 0.0
    %523 = vmatpush1.msra.mxu0 0.0
    %524 = vmatprep.subr.mxu0 0.0
    %525 = vmatpush1.msra.mxu0 0.0
    %526 = vmatprep.subr.mxu0 0.0
    %527 = vmatpush1.msra.mxu0 0.0
    %528 = vmatprep.subr.mxu0 0.0
    %529 = vmatpush1.msra.mxu0 0.0
    %530 = vmatprep.subr.mxu0 0.0
    %531 = vmatpush1.msra.mxu0 0.0
    %532 = vmatprep.subr.mxu0 0.0
    %533 = vmatpush1.msra.mxu0 0.0
    %534 = vmatprep.subr.mxu0 0.0
    %535 = vmatpush1.msra.mxu0 0.0
    %536 = vmatprep.subr.mxu0 0.0
    %537 = vmatpush1.msra.mxu0 0.0
    %538 = vmatprep.subr.mxu0 0.0
    %539 = vmatpush1.msra.mxu0 0.0
    %540 = vmatprep.subr.mxu0 0.0
    %541 = vmatpush1.msra.mxu0 0.0
    %542 = vmatprep.subr.mxu0 0.0
    %543 = vmatpush1.msra.mxu0 0.0
    %544 = vmatprep.subr.mxu0 0.0
    %545 = vmatpush1.msra.mxu0 0.0
    %546 = vmatprep.subr.mxu0 0.0
    %547 = vmatpush1.msra.mxu0 0.0
    %548 = vmatprep.subr.mxu0 0.0
    %549 = vmatpush1.msra.mxu0 0.0
    %550 = vmatprep.subr.mxu0 0.0
    %551 = vmatpush1.msra.mxu0 0.0
    %552 = vmatprep.mubr.f32.mxu0 0.0
    %553 = vmatmul.mubr.f32.gmra.mrb[0].mxu0 %v486
    %v554 = vpop.f32.mrb[0].mxu0
    %v555 = vadd.f32 0.0, %v554
    %v556 = vpop.f32.mrb[0].mxu0
    %v557 = vadd.f32 0.0, %v556
    %558 = vdwg.mxu0
    %559 = vmatprep.subr.mxu0 0.0
    %560 = vmatpush1.msra.mxu0 %v233
    %561 = vmatprep.subr.mxu0 0.0
    %562 = vmatpush1.msra.mxu0 %v236
    %563 = vmatprep.subr.mxu0 0.0
    %564 = vmatpush1.msra.mxu0 %v239
    %565 = vmatprep.subr.mxu0 0.0
    %566 = vmatpush1.msra.mxu0 %v242
    %567 = vmatprep.subr.mxu0 0.0
    %568 = vmatpush1.msra.mxu0 %v245
    %569 = vmatprep.subr.mxu0 0.0
    %570 = vmatpush1.msra.mxu0 %v248
    %571 = vmatprep.subr.mxu0 0.0
    %572 = vmatpush1.msra.mxu0 %v251
    %573 = vmatprep.subr.mxu0 0.0
    %574 = vmatpush1.msra.mxu0 %v254
    %575 = vmatprep.subr.mxu0 0.0
    %576 = vmatpush1.msra.mxu0 %v257
    %577 = vmatprep.subr.mxu0 0.0
    %578 = vmatpush1.msra.mxu0 %v260
    %579 = vmatprep.subr.mxu0 0.0
    %580 = vmatpush1.msra.mxu0 %v263
    %581 = vmatprep.subr.mxu0 0.0
    %582 = vmatpush1.msra.mxu0 %v266
    %583 = vmatprep.subr.mxu0 0.0
    %584 = vmatpush1.msra.mxu0 %v269
    %585 = vmatprep.subr.mxu0 0.0
    %586 = vmatpush1.msra.mxu0 %v272
    %587 = vmatprep.subr.mxu0 0.0
    %588 = vmatpush1.msra.mxu0 %v275
    %589 = vmatprep.subr.mxu0 0.0
    %590 = vmatpush1.msra.mxu0 %v278
    %591 = vmatprep.subr.mxu0 0.0
    %592 = vmatpush1.msra.mxu0 0.0
    %593 = vmatprep.subr.mxu0 0.0
    %594 = vmatpush1.msra.mxu0 0.0
    %595 = vmatprep.subr.mxu0 0.0
    %596 = vmatpush1.msra.mxu0 0.0
    %597 = vmatprep.subr.mxu0 0.0
    %598 = vmatpush1.msra.mxu0 0.0
    %599 = vmatprep.subr.mxu0 0.0
    %600 = vmatpush1.msra.mxu0 0.0
    %601 = vmatprep.subr.mxu0 0.0
    %602 = vmatpush1.msra.mxu0 0.0
    %603 = vmatprep.subr.mxu0 0.0
    %604 = vmatpush1.msra.mxu0 0.0
    %605 = vmatprep.subr.mxu0 0.0
    %606 = vmatpush1.msra.mxu0 0.0
    %607 = vmatprep.subr.mxu0 0.0
    %608 = vmatpush1.msra.mxu0 0.0
    %609 = vmatprep.subr.mxu0 0.0
    %610 = vmatpush1.msra.mxu0 0.0
    %611 = vmatprep.subr.mxu0 0.0
    %612 = vmatpush1.msra.mxu0 0.0
    %613 = vmatprep.subr.mxu0 0.0
    %614 = vmatpush1.msra.mxu0 0.0
    %615 = vmatprep.subr.mxu0 0.0
    %616 = vmatpush1.msra.mxu0 0.0
    %617 = vmatprep.subr.mxu0 0.0
    %618 = vmatpush1.msra.mxu0 0.0
    %619 = vmatprep.subr.mxu0 0.0
    %620 = vmatpush1.msra.mxu0 0.0
    %621 = vmatprep.subr.mxu0 0.0
    %622 = vmatpush1.msra.mxu0 0.0
    %623 = vmatprep.mubr.f32.mxu0 0.0
    %624 = vmatmul.mubr.f32.gmra.mrb[0].mxu0 %v486
    %v625 = vpop.f32.mrb[0].mxu0
    %v626 = vadd.f32 0.0, %v625
    %v627 = vpop.f32.mrb[0].mxu0
    %628 = vdwg.mxu0
    %v630 = vrot.slane %v555, 7
    %v633 = vadd.f32 %v146, %v630
    %v634 = vadd.f32 %v152, %v555
    %v635 = vxor.u32 %v633, 2147483648
    %v636 = vxor.u32 %v634, 2147483648
    %v637 = vmul.f32 %v635, 1.442695
    %v638 = vpow.pop %v637
    %v639 = vmul.f32 %v636, 1.442695
    %v640 = vpow.pop %v639
    %v641 = vadd.f32 %v638, 1.0
    %v642 = vadd.f32 %v640, 1.0
    %v643 = vrcp.pop %v641
    %v644 = vmul.f32 1.0, %v643
    %v645 = vrcp.pop %v642
    %v646 = vmul.f32 1.0, %v645
    %v648 = vrot.slane %v557, 7
    %v651 = vadd.f32 %v148, %v648
    %v652 = vadd.f32 %v154, %v557
    %v653 = vxor.u32 %v651, 2147483648
    %v654 = vxor.u32 %v652, 2147483648
    %v655 = vmul.f32 %v653, 1.442695
    %v656 = vpow.pop %v655
    %v657 = vmul.f32 %v654, 1.442695
    %v658 = vpow.pop %v657
    %v659 = vadd.f32 %v656, 1.0
    %v660 = vadd.f32 %v658, 1.0
    %v661 = vrcp.pop %v659
    %v662 = vmul.f32 1.0, %v661
    %v663 = vrcp.pop %v660
    %v664 = vmul.f32 1.0, %v663
    %v665 = vadd.f32 %v626, %v461
    %v667 = vrot.slane %v665, 7
    %v670 = vmul.f32 %v644, %v667
    %v671 = vmul.f32 %v646, %v665
    %v672 = vadd.f32 %v223, %v670
    %v673 = vadd.f32 %v228, %v671
    %v674 = vtanh.pop %v672
    %v675 = vtanh.pop %v673
    %v676 = vsub.f32 1.0, %v662
    %v677 = vsub.f32 1.0, %v664
    %v678 = vmul.f32 %v676, %v674
    %v679 = vmul.f32 %v677, %v675
    %v680 = vrot.slane %v480, 7
    %v683 = vmul.f32 %v662, %v680
    %v684 = vmul.f32 %v664, %v484
    %v685 = vadd.f32 %v678, %v683
    %v686 = vadd.f32 %v679, %v684
    %v689 = vrot.slane %v685, 1
    %v690 = vsel %vm485, %v686, %v689
    %692 = vmatprep.subr.mxu0 %v232
    %693 = vmatpush1.msra.mxu0 %v231
    %694 = vmatprep.subr.mxu0 %v235
    %695 = vmatpush1.msra.mxu0 %v234
    %696 = vmatprep.subr.mxu0 %v238
    %697 = vmatpush1.msra.mxu0 %v237
    %698 = vmatprep.subr.mxu0 %v241
    %699 = vmatpush1.msra.mxu0 %v240
    %700 = vmatprep.subr.mxu0 %v244
    %701 = vmatpush1.msra.mxu0 %v243
    %702 = vmatprep.subr.mxu0 %v247
    %703 = vmatpush1.msra.mxu0 %v246
    %704 = vmatprep.subr.mxu0 %v250
    %705 = vmatpush1.msra.mxu0 %v249
    %706 = vmatprep.subr.mxu0 %v253
    %707 = vmatpush1.msra.mxu0 %v252
    %708 = vmatprep.subr.mxu0 %v256
    %709 = vmatpush1.msra.mxu0 %v255
    %710 = vmatprep.subr.mxu0 %v259
    %711 = vmatpush1.msra.mxu0 %v258
    %712 = vmatprep.subr.mxu0 %v262
    %713 = vmatpush1.msra.mxu0 %v261
    %714 = vmatprep.subr.mxu0 %v265
    %715 = vmatpush1.msra.mxu0 %v264
    %716 = vmatprep.subr.mxu0 %v268
    %717 = vmatpush1.msra.mxu0 %v267
    %718 = vmatprep.subr.mxu0 %v271
    %719 = vmatpush1.msra.mxu0 %v270
    %720 = vmatprep.subr.mxu0 %v274
    %721 = vmatpush1.msra.mxu0 %v273
    %722 = vmatprep.subr.mxu0 %v277
    %723 = vmatpush1.msra.mxu0 %v276
    %724 = vmatprep.subr.mxu0 0.0
    %725 = vmatpush1.msra.mxu0 0.0
    %726 = vmatprep.subr.mxu0 0.0
    %727 = vmatpush1.msra.mxu0 0.0
    %728 = vmatprep.subr.mxu0 0.0
    %729 = vmatpush1.msra.mxu0 0.0
    %730 = vmatprep.subr.mxu0 0.0
    %731 = vmatpush1.msra.mxu0 0.0
    %732 = vmatprep.subr.mxu0 0.0
    %733 = vmatpush1.msra.mxu0 0.0
    %734 = vmatprep.subr.mxu0 0.0
    %735 = vmatpush1.msra.mxu0 0.0
    %736 = vmatprep.subr.mxu0 0.0
    %737 = vmatpush1.msra.mxu0 0.0
    %738 = vmatprep.subr.mxu0 0.0
    %739 = vmatpush1.msra.mxu0 0.0
    %740 = vmatprep.subr.mxu0 0.0
    %741 = vmatpush1.msra.mxu0 0.0
    %742 = vmatprep.subr.mxu0 0.0
    %743 = vmatpush1.msra.mxu0 0.0
    %744 = vmatprep.subr.mxu0 0.0
    %745 = vmatpush1.msra.mxu0 0.0
    %746 = vmatprep.subr.mxu0 0.0
    %747 = vmatpush1.msra.mxu0 0.0
    %748 = vmatprep.subr.mxu0 0.0
    %749 = vmatpush1.msra.mxu0 0.0
    %750 = vmatprep.subr.mxu0 0.0
    %751 = vmatpush1.msra.mxu0 0.0
    %752 = vmatprep.subr.mxu0 0.0
    %753 = vmatpush1.msra.mxu0 0.0
    %754 = vmatprep.subr.mxu0 0.0
    %755 = vmatpush1.msra.mxu0 0.0
    %756 = vmatprep.mubr.f32.mxu0 0.0
    %757 = vmatmul.mubr.f32.gmra.mrb[0].mxu0 %v690
    %v758 = vpop.f32.mrb[0].mxu0
    %v759 = vadd.f32 0.0, %v758
    %v760 = vpop.f32.mrb[0].mxu0
    %v761 = vadd.f32 0.0, %v760
    %762 = vdwg.mxu0
    %763 = vmatprep.subr.mxu0 0.0
    %764 = vmatpush1.msra.mxu0 %v233
    %765 = vmatprep.subr.mxu0 0.0
    %766 = vmatpush1.msra.mxu0 %v236
    %767 = vmatprep.subr.mxu0 0.0
    %768 = vmatpush1.msra.mxu0 %v239
    %769 = vmatprep.subr.mxu0 0.0
    %770 = vmatpush1.msra.mxu0 %v242
    %771 = vmatprep.subr.mxu0 0.0
    %772 = vmatpush1.msra.mxu0 %v245
    %773 = vmatprep.subr.mxu0 0.0
    %774 = vmatpush1.msra.mxu0 %v248
    %775 = vmatprep.subr.mxu0 0.0
    %776 = vmatpush1.msra.mxu0 %v251
    %777 = vmatprep.subr.mxu0 0.0
    %778 = vmatpush1.msra.mxu0 %v254
    %779 = vmatprep.subr.mxu0 0.0
    %780 = vmatpush1.msra.mxu0 %v257
    %781 = vmatprep.subr.mxu0 0.0
    %782 = vmatpush1.msra.mxu0 %v260
    %783 = vmatprep.subr.mxu0 0.0
    %784 = vmatpush1.msra.mxu0 %v263
    %785 = vmatprep.subr.mxu0 0.0
    %786 = vmatpush1.msra.mxu0 %v266
    %787 = vmatprep.subr.mxu0 0.0
    %788 = vmatpush1.msra.mxu0 %v269
    %789 = vmatprep.subr.mxu0 0.0
    %790 = vmatpush1.msra.mxu0 %v272
    %791 = vmatprep.subr.mxu0 0.0
    %792 = vmatpush1.msra.mxu0 %v275
    %793 = vmatprep.subr.mxu0 0.0
    %794 = vmatpush1.msra.mxu0 %v278
    %795 = vmatprep.subr.mxu0 0.0
    %796 = vmatpush1.msra.mxu0 0.0
    %797 = vmatprep.subr.mxu0 0.0
    %798 = vmatpush1.msra.mxu0 0.0
    %799 = vmatprep.subr.mxu0 0.0
    %800 = vmatpush1.msra.mxu0 0.0
    %801 = vmatprep.subr.mxu0 0.0
    %802 = vmatpush1.msra.mxu0 0.0
    %803 = vmatprep.subr.mxu0 0.0
    %804 = vmatpush1.msra.mxu0 0.0
    %805 = vmatprep.subr.mxu0 0.0
    %806 = vmatpush1.msra.mxu0 0.0
    %807 = vmatprep.subr.mxu0 0.0
    %808 = vmatpush1.msra.mxu0 0.0
    %809 = vmatprep.subr.mxu0 0.0
    %810 = vmatpush1.msra.mxu0 0.0
    %811 = vmatprep.subr.mxu0 0.0
    %812 = vmatpush1.msra.mxu0 0.0
    %813 = vmatprep.subr.mxu0 0.0
    %814 = vmatpush1.msra.mxu0 0.0
    %815 = vmatprep.subr.mxu0 0.0
    %816 = vmatpush1.msra.mxu0 0.0
    %817 = vmatprep.subr.mxu0 0.0
    %818 = vmatpush1.msra.mxu0 0.0
    %819 = vmatprep.subr.mxu0 0.0
    %820 = vmatpush1.msra.mxu0 0.0
    %821 = vmatprep.subr.mxu0 0.0
    %822 = vmatpush1.msra.mxu0 0.0
    %823 = vmatprep.subr.mxu0 0.0
    %824 = vmatpush1.msra.mxu0 0.0
    %825 = vmatprep.subr.mxu0 0.0
    %826 = vmatpush1.msra.mxu0 0.0
    %827 = vmatprep.mubr.f32.mxu0 0.0
    %828 = vmatmul.mubr.f32.gmra.mrb[0].mxu0 %v690
    %v829 = vpop.f32.mrb[0].mxu0
    %v830 = vadd.f32 0.0, %v829
    %v831 = vpop.f32.mrb[0].mxu0
    %832 = vdwg.mxu0
    %v834 = vrot.slane %v759, 6
    %v835 = vrot.slane %v759, 7
    %v838 = vadd.f32 %v146, %v834
    %v839 = vadd.f32 %v152, %v835
    %v840 = vxor.u32 %v838, 2147483648
    %v841 = vxor.u32 %v839, 2147483648
    %v842 = vmul.f32 %v840, 1.442695
    %v843 = vpow.pop %v842
    %v844 = vmul.f32 %v841, 1.442695
    %v845 = vpow.pop %v844
    %v846 = vadd.f32 %v843, 1.0
    %v847 = vadd.f32 %v845, 1.0
    %v848 = vrcp.pop %v846
    %v849 = vmul.f32 1.0, %v848
    %v850 = vrcp.pop %v847
    %v851 = vmul.f32 1.0, %v850
    %v853 = vrot.slane %v761, 6
    %v854 = vrot.slane %v761, 7
    %v857 = vadd.f32 %v148, %v853
    %v858 = vadd.f32 %v154, %v854
    %v859 = vxor.u32 %v857, 2147483648
    %v860 = vxor.u32 %v858, 2147483648
    %v861 = vmul.f32 %v859, 1.442695
    %v862 = vpow.pop %v861
    %v863 = vmul.f32 %v860, 1.442695
    %v864 = vpow.pop %v863
    %v865 = vadd.f32 %v862, 1.0
    %v866 = vadd.f32 %v864, 1.0
    %v867 = vrcp.pop %v865
    %v868 = vmul.f32 1.0, %v867
    %v869 = vrcp.pop %v866
    %v870 = vmul.f32 1.0, %v869
    %v871 = vadd.f32 %v830, %v461
    %v873 = vrot.slane %v871, 6
    %v874 = vrot.slane %v871, 7
    %v877 = vmul.f32 %v849, %v873
    %v878 = vmul.f32 %v851, %v874
    %v879 = vadd.f32 %v223, %v877
    %v880 = vadd.f32 %v228, %v878
    %v881 = vtanh.pop %v879
    %v882 = vtanh.pop %v880
    %v883 = vsub.f32 1.0, %v868
    %v884 = vsub.f32 1.0, %v870
    %v885 = vmul.f32 %v883, %v881
    %v886 = vmul.f32 %v884, %v882
    %v887 = vrot.slane %v685, 7
    %v888 = vrot.slane %v686, 7
    %v891 = vmul.f32 %v868, %v887
    %v892 = vmul.f32 %v870, %v888
    %v893 = vadd.f32 %v885, %v891
    %v894 = vadd.f32 %v886, %v892
    %v897 = vrot.slane %v893, 2
    %v898 = vrot.slane %v894, 1
    %v899 = vsel %vm485, %v898, %v897
    %901 = vmatprep.subr.mxu0 %v232
    %902 = vmatpush1.msra.mxu0 %v231
    %903 = vmatprep.subr.mxu0 %v235
    %904 = vmatpush1.msra.mxu0 %v234
    %905 = vmatprep.subr.mxu0 %v238
    %906 = vmatpush1.msra.mxu0 %v237
    %907 = vmatprep.subr.mxu0 %v241
    %908 = vmatpush1.msra.mxu0 %v240
    %909 = vmatprep.subr.mxu0 %v244
    %910 = vmatpush1.msra.mxu0 %v243
    %911 = vmatprep.subr.mxu0 %v247
    %912 = vmatpush1.msra.mxu0 %v246
    %913 = vmatprep.subr.mxu0 %v250
    %914 = vmatpush1.msra.mxu0 %v249
    %915 = vmatprep.subr.mxu0 %v253
    %916 = vmatpush1.msra.mxu0 %v252
    %917 = vmatprep.subr.mxu0 %v256
    %918 = vmatpush1.msra.mxu0 %v255
    %919 = vmatprep.subr.mxu0 %v259
    %920 = vmatpush1.msra.mxu0 %v258
    %921 = vmatprep.subr.mxu0 %v262
    %922 = vmatpush1.msra.mxu0 %v261
    %923 = vmatprep.subr.mxu0 %v265
    %924 = vmatpush1.msra.mxu0 %v264
    %925 = vmatprep.subr.mxu0 %v268
    %926 = vmatpush1.msra.mxu0 %v267
    %927 = vmatprep.subr.mxu0 %v271
    %928 = vmatpush1.msra.mxu0 %v270
    %929 = vmatprep.subr.mxu0 %v274
    %930 = vmatpush1.msra.mxu0 %v273
    %931 = vmatprep.subr.mxu0 %v277
    %932 = vmatpush1.msra.mxu0 %v276
    %933 = vmatprep.subr.mxu0 0.0
    %934 = vmatpush1.msra.mxu0 0.0
    %935 = vmatprep.subr.mxu0 0.0
    %936 = vmatpush1.msra.mxu0 0.0
    %937 = vmatprep.subr.mxu0 0.0
    %938 = vmatpush1.msra.mxu0 0.0
    %939 = vmatprep.subr.mxu0 0.0
    %940 = vmatpush1.msra.mxu0 0.0
    %941 = vmatprep.subr.mxu0 0.0
    %942 = vmatpush1.msra.mxu0 0.0
    %943 = vmatprep.subr.mxu0 0.0
    %944 = vmatpush1.msra.mxu0 0.0
    %945 = vmatprep.subr.mxu0 0.0
    %946 = vmatpush1.msra.mxu0 0.0
    %947 = vmatprep.subr.mxu0 0.0
    %948 = vmatpush1.msra.mxu0 0.0
    %949 = vmatprep.subr.mxu0 0.0
    %950 = vmatpush1.msra.mxu0 0.0
    %951 = vmatprep.subr.mxu0 0.0
    %952 = vmatpush1.msra.mxu0 0.0
    %953 = vmatprep.subr.mxu0 0.0
    %954 = vmatpush1.msra.mxu0 0.0
    %955 = vmatprep.subr.mxu0 0.0
    %956 = vmatpush1.msra.mxu0 0.0
    %957 = vmatprep.subr.mxu0 0.0
    %958 = vmatpush1.msra.mxu0 0.0
    %959 = vmatprep.subr.mxu0 0.0
    %960 = vmatpush1.msra.mxu0 0.0
    %961 = vmatprep.subr.mxu0 0.0
    %962 = vmatpush1.msra.mxu0 0.0
    %963 = vmatprep.subr.mxu0 0.0
    %964 = vmatpush1.msra.mxu0 0.0
    %965 = vmatprep.mubr.f32.mxu0 0.0
    %966 = vmatmul.mubr.f32.gmra.mrb[0].mxu0 %v899
    %v967 = vpop.f32.mrb[0].mxu0
    %v968 = vadd.f32 0.0, %v967
    %v969 = vpop.f32.mrb[0].mxu0
    %v970 = vadd.f32 0.0, %v969
    %971 = vdwg.mxu0
    %972 = vmatprep.subr.mxu0 0.0
    %973 = vmatpush1.msra.mxu0 %v233
    %974 = vmatprep.subr.mxu0 0.0
    %975 = vmatpush1.msra.mxu0 %v236
    %976 = vmatprep.subr.mxu0 0.0
    %977 = vmatpush1.msra.mxu0 %v239
    %978 = vmatprep.subr.mxu0 0.0
    %979 = vmatpush1.msra.mxu0 %v242
    %980 = vmatprep.subr.mxu0 0.0
    %981 = vmatpush1.msra.mxu0 %v245
    %982 = vmatprep.subr.mxu0 0.0
    %983 = vmatpush1.msra.mxu0 %v248
    %984 = vmatprep.subr.mxu0 0.0
    %985 = vmatpush1.msra.mxu0 %v251
    %986 = vmatprep.subr.mxu0 0.0
    %987 = vmatpush1.msra.mxu0 %v254
    %988 = vmatprep.subr.mxu0 0.0
    %989 = vmatpush1.msra.mxu0 %v257
    %990 = vmatprep.subr.mxu0 0.0
    %991 = vmatpush1.msra.mxu0 %v260
    %992 = vmatprep.subr.mxu0 0.0
    %993 = vmatpush1.msra.mxu0 %v263
    %994 = vmatprep.subr.mxu0 0.0
    %995 = vmatpush1.msra.mxu0 %v266
    %996 = vmatprep.subr.mxu0 0.0
    %997 = vmatpush1.msra.mxu0 %v269
    %998 = vmatprep.subr.mxu0 0.0
    %999 = vmatpush1.msra.mxu0 %v272
    %1000 = vmatprep.subr.mxu0 0.0
    %1001 = vmatpush1.msra.mxu0 %v275
    %1002 = vmatprep.subr.mxu0 0.0
    %1003 = vmatpush1.msra.mxu0 %v278
    %1004 = vmatprep.subr.mxu0 0.0
    %1005 = vmatpush1.msra.mxu0 0.0
    %1006 = vmatprep.subr.mxu0 0.0
    %1007 = vmatpush1.msra.mxu0 0.0
    %1008 = vmatprep.subr.mxu0 0.0
    %1009 = vmatpush1.msra.mxu0 0.0
    %1010 = vmatprep.subr.mxu0 0.0
    %1011 = vmatpush1.msra.mxu0 0.0
    %1012 = vmatprep.subr.mxu0 0.0
    %1013 = vmatpush1.msra.mxu0 0.0
    %1014 = vmatprep.subr.mxu0 0.0
    %1015 = vmatpush1.msra.mxu0 0.0
    %1016 = vmatprep.subr.mxu0 0.0
    %1017 = vmatpush1.msra.mxu0 0.0
    %1018 = vmatprep.subr.mxu0 0.0
    %1019 = vmatpush1.msra.mxu0 0.0
    %1020 = vmatprep.subr.mxu0 0.0
    %1021 = vmatpush1.msra.mxu0 0.0
    %1022 = vmatprep.subr.mxu0 0.0
    %1023 = vmatpush1.msra.mxu0 0.0
    %1024 = vmatprep.subr.mxu0 0.0
    %1025 = vmatpush1.msra.mxu0 0.0
    %1026 = vmatprep.subr.mxu0 0.0
    %1027 = vmatpush1.msra.mxu0 0.0
    %1028 = vmatprep.subr.mxu0 0.0
    %1029 = vmatpush1.msra.mxu0 0.0
    %1030 = vmatprep.subr.mxu0 0.0
    %1031 = vmatpush1.msra.mxu0 0.0
    %1032 = vmatprep.subr.mxu0 0.0
    %1033 = vmatpush1.msra.mxu0 0.0
    %1034 = vmatprep.subr.mxu0 0.0
    %1035 = vmatpush1.msra.mxu0 0.0
    %1036 = vmatprep.mubr.f32.mxu0 0.0
    %1037 = vmatmul.mubr.f32.gmra.mrb[0].mxu0 %v899
    %v1038 = vpop.f32.mrb[0].mxu0
    %v1039 = vadd.f32 0.0, %v1038
    %v1040 = vpop.f32.mrb[0].mxu0
    %1041 = vdwg.mxu0
    %v1043 = vrot.slane %v968, 5
    %v1044 = vrot.slane %v968, 6
    %v1047 = vadd.f32 %v146, %v1043
    %v1048 = vadd.f32 %v152, %v1044
    %v1049 = vxor.u32 %v1047, 2147483648
    %v1050 = vxor.u32 %v1048, 2147483648
    %v1051 = vmul.f32 %v1049, 1.442695
    %v1052 = vpow.pop %v1051
    %v1053 = vmul.f32 %v1050, 1.442695
    %v1054 = vpow.pop %v1053
    %v1055 = vadd.f32 %v1052, 1.0
    %v1056 = vadd.f32 %v1054, 1.0
    %v1057 = vrcp.pop %v1055
    %v1058 = vmul.f32 1.0, %v1057
    %v1059 = vrcp.pop %v1056
    %v1060 = vmul.f32 1.0, %v1059
    %v1062 = vrot.slane %v970, 5
    %v1063 = vrot.slane %v970, 6
    %v1066 = vadd.f32 %v148, %v1062
    %v1067 = vadd.f32 %v154, %v1063
    %v1068 = vxor.u32 %v1066, 2147483648
    %v1069 = vxor.u32 %v1067, 2147483648
    %v1070 = vmul.f32 %v1068, 1.442695
    %v1071 = vpow.pop %v1070
    %v1072 = vmul.f32 %v1069, 1.442695
    %v1073 = vpow.pop %v1072
    %v1074 = vadd.f32 %v1071, 1.0
    %v1075 = vadd.f32 %v1073, 1.0
    %v1076 = vrcp.pop %v1074
    %v1077 = vmul.f32 1.0, %v1076
    %v1078 = vrcp.pop %v1075
    %v1079 = vmul.f32 1.0, %v1078
    %v1080 = vadd.f32 %v1039, %v461
    %v1082 = vrot.slane %v1080, 5
    %v1083 = vrot.slane %v1080, 6
    %v1086 = vmul.f32 %v1058, %v1082
    %v1087 = vmul.f32 %v1060, %v1083
    %v1088 = vadd.f32 %v223, %v1086
    %v1089 = vadd.f32 %v228, %v1087
    %v1090 = vtanh.pop %v1088
    %v1091 = vtanh.pop %v1089
    %v1092 = vsub.f32 1.0, %v1077
    %v1093 = vsub.f32 1.0, %v1079
    %v1094 = vmul.f32 %v1092, %v1090
    %v1095 = vmul.f32 %v1093, %v1091
    %v1096 = vrot.slane %v893, 7
    %v1097 = vrot.slane %v894, 7
    %v1100 = vmul.f32 %v1077, %v1096
    %v1101 = vmul.f32 %v1079, %v1097
    %v1102 = vadd.f32 %v1094, %v1100
    %v1103 = vadd.f32 %v1095, %v1101
    %v1106 = vrot.slane %v1102, 3
    %v1107 = vrot.slane %v1103, 2
    %v1108 = vsel %vm485, %v1107, %v1106
    %1110 = vmatprep.subr.mxu0 %v232
    %1111 = vmatpush1.msra.mxu0 %v231
    %1112 = vmatprep.subr.mxu0 %v235
    %1113 = vmatpush1.msra.mxu0 %v234
    %1114 = vmatprep.subr.mxu0 %v238
    %1115 = vmatpush1.msra.mxu0 %v237
    %1116 = vmatprep.subr.mxu0 %v241
    %1117 = vmatpush1.msra.mxu0 %v240
    %1118 = vmatprep.subr.mxu0 %v244
    %1119 = vmatpush1.msra.mxu0 %v243
    %1120 = vmatprep.subr.mxu0 %v247
    %1121 = vmatpush1.msra.mxu0 %v246
    %1122 = vmatprep.subr.mxu0 %v250
    %1123 = vmatpush1.msra.mxu0 %v249
    %1124 = vmatprep.subr.mxu0 %v253
    %1125 = vmatpush1.msra.mxu0 %v252
    %1126 = vmatprep.subr.mxu0 %v256
    %1127 = vmatpush1.msra.mxu0 %v255
    %1128 = vmatprep.subr.mxu0 %v259
    %1129 = vmatpush1.msra.mxu0 %v258
    %1130 = vmatprep.subr.mxu0 %v262
    %1131 = vmatpush1.msra.mxu0 %v261
    %1132 = vmatprep.subr.mxu0 %v265
    %1133 = vmatpush1.msra.mxu0 %v264
    %1134 = vmatprep.subr.mxu0 %v268
    %1135 = vmatpush1.msra.mxu0 %v267
    %1136 = vmatprep.subr.mxu0 %v271
    %1137 = vmatpush1.msra.mxu0 %v270
    %1138 = vmatprep.subr.mxu0 %v274
    %1139 = vmatpush1.msra.mxu0 %v273
    %1140 = vmatprep.subr.mxu0 %v277
    %1141 = vmatpush1.msra.mxu0 %v276
    %1142 = vmatprep.subr.mxu0 0.0
    %1143 = vmatpush1.msra.mxu0 0.0
    %1144 = vmatprep.subr.mxu0 0.0
    %1145 = vmatpush1.msra.mxu0 0.0
    %1146 = vmatprep.subr.mxu0 0.0
    %1147 = vmatpush1.msra.mxu0 0.0
    %1148 = vmatprep.subr.mxu0 0.0
    %1149 = vmatpush1.msra.mxu0 0.0
    %1150 = vmatprep.subr.mxu0 0.0
    %1151 = vmatpush1.msra.mxu0 0.0
    %1152 = vmatprep.subr.mxu0 0.0
    %1153 = vmatpush1.msra.mxu0 0.0
    %1154 = vmatprep.subr.mxu0 0.0
    %1155 = vmatpush1.msra.mxu0 0.0
    %1156 = vmatprep.subr.mxu0 0.0
    %1157 = vmatpush1.msra.mxu0 0.0
    %1158 = vmatprep.subr.mxu0 0.0
    %1159 = vmatpush1.msra.mxu0 0.0
    %1160 = vmatprep.subr.mxu0 0.0
    %1161 = vmatpush1.msra.mxu0 0.0
    %1162 = vmatprep.subr.mxu0 0.0
    %1163 = vmatpush1.msra.mxu0 0.0
    %1164 = vmatprep.subr.mxu0 0.0
    %1165 = vmatpush1.msra.mxu0 0.0
    %1166 = vmatprep.subr.mxu0 0.0
    %1167 = vmatpush1.msra.mxu0 0.0
    %1168 = vmatprep.subr.mxu0 0.0
    %1169 = vmatpush1.msra.mxu0 0.0
    %1170 = vmatprep.subr.mxu0 0.0
    %1171 = vmatpush1.msra.mxu0 0.0
    %1172 = vmatprep.subr.mxu0 0.0
    %1173 = vmatpush1.msra.mxu0 0.0
    %1174 = vmatprep.mubr.f32.mxu0 0.0
    %1175 = vmatmul.mubr.f32.gmra.mrb[0].mxu0 %v1108
    %v1176 = vpop.f32.mrb[0].mxu0
    %v1177 = vadd.f32 0.0, %v1176
    %v1178 = vpop.f32.mrb[0].mxu0
    %v1179 = vadd.f32 0.0, %v1178
    %1180 = vdwg.mxu0
    %1181 = vmatprep.subr.mxu0 0.0
    %1182 = vmatpush1.msra.mxu0 %v233
    %1183 = vmatprep.subr.mxu0 0.0
    %1184 = vmatpush1.msra.mxu0 %v236
    %1185 = vmatprep.subr.mxu0 0.0
    %1186 = vmatpush1.msra.mxu0 %v239
    %1187 = vmatprep.subr.mxu0 0.0
    %1188 = vmatpush1.msra.mxu0 %v242
    %1189 = vmatprep.subr.mxu0 0.0
    %1190 = vmatpush1.msra.mxu0 %v245
    %1191 = vmatprep.subr.mxu0 0.0
    %1192 = vmatpush1.msra.mxu0 %v248
    %1193 = vmatprep.subr.mxu0 0.0
    %1194 = vmatpush1.msra.mxu0 %v251
    %1195 = vmatprep.subr.mxu0 0.0
    %1196 = vmatpush1.msra.mxu0 %v254
    %1197 = vmatprep.subr.mxu0 0.0
    %1198 = vmatpush1.msra.mxu0 %v257
    %1199 = vmatprep.subr.mxu0 0.0
    %1200 = vmatpush1.msra.mxu0 %v260
    %1201 = vmatprep.subr.mxu0 0.0
    %1202 = vmatpush1.msra.mxu0 %v263
    %1203 = vmatprep.subr.mxu0 0.0
    %1204 = vmatpush1.msra.mxu0 %v266
    %1205 = vmatprep.subr.mxu0 0.0
    %1206 = vmatpush1.msra.mxu0 %v269
    %1207 = vmatprep.subr.mxu0 0.0
    %1208 = vmatpush1.msra.mxu0 %v272
    %1209 = vmatprep.subr.mxu0 0.0
    %1210 = vmatpush1.msra.mxu0 %v275
    %1211 = vmatprep.subr.mxu0 0.0
    %1212 = vmatpush1.msra.mxu0 %v278
    %1213 = vmatprep.subr.mxu0 0.0
    %1214 = vmatpush1.msra.mxu0 0.0
    %1215 = vmatprep.subr.mxu0 0.0
    %1216 = vmatpush1.msra.mxu0 0.0
    %1217 = vmatprep.subr.mxu0 0.0
    %1218 = vmatpush1.msra.mxu0 0.0
    %1219 = vmatprep.subr.mxu0 0.0
    %1220 = vmatpush1.msra.mxu0 0.0
    %1221 = vmatprep.subr.mxu0 0.0
    %1222 = vmatpush1.msra.mxu0 0.0
    %1223 = vmatprep.subr.mxu0 0.0
    %1224 = vmatpush1.msra.mxu0 0.0
    %1225 = vmatprep.subr.mxu0 0.0
    %1226 = vmatpush1.msra.mxu0 0.0
    %1227 = vmatprep.subr.mxu0 0.0
    %1228 = vmatpush1.msra.mxu0 0.0
    %1229 = vmatprep.subr.mxu0 0.0
    %1230 = vmatpush1.msra.mxu0 0.0
    %1231 = vmatprep.subr.mxu0 0.0
    %1232 = vmatpush1.msra.mxu0 0.0
    %1233 = vmatprep.subr.mxu0 0.0
    %1234 = vmatpush1.msra.mxu0 0.0
    %1235 = vmatprep.subr.mxu0 0.0
    %1236 = vmatpush1.msra.mxu0 0.0
    %1237 = vmatprep.subr.mxu0 0.0
    %1238 = vmatpush1.msra.mxu0 0.0
    %1239 = vmatprep.subr.mxu0 0.0
    %1240 = vmatpush1.msra.mxu0 0.0
    %1241 = vmatprep.subr.mxu0 0.0
    %1242 = vmatpush1.msra.mxu0 0.0
    %1243 = vmatprep.subr.mxu0 0.0
    %1244 = vmatpush1.msra.mxu0 0.0
    %1245 = vmatprep.mubr.f32.mxu0 0.0
    %1246 = vmatmul.mubr.f32.gmra.mrb[0].mxu0 %v1108
    %v1247 = vpop.f32.mrb[0].mxu0
    %v1248 = vadd.f32 0.0, %v1247
    %v1249 = vpop.f32.mrb[0].mxu0
    %1250 = vdwg.mxu0
    %v1252 = vrot.slane %v1177, 4
    %v1253 = vrot.slane %v1177, 5
    %v1256 = vadd.f32 %v146, %v1252
    %v1257 = vadd.f32 %v152, %v1253
    %v1258 = vxor.u32 %v1256, 2147483648
    %v1259 = vxor.u32 %v1257, 2147483648
    %v1260 = vmul.f32 %v1258, 1.442695
    %v1261 = vpow.pop %v1260
    %v1262 = vmul.f32 %v1259, 1.442695
    %v1263 = vpow.pop %v1262
    %v1264 = vadd.f32 %v1261, 1.0
    %v1265 = vadd.f32 %v1263, 1.0
    %v1266 = vrcp.pop %v1264
    %v1267 = vmul.f32 1.0, %v1266
    %v1268 = vrcp.pop %v1265
    %v1269 = vmul.f32 1.0, %v1268
    %v1271 = vrot.slane %v1179, 4
    %v1272 = vrot.slane %v1179, 5
    %v1275 = vadd.f32 %v148, %v1271
    %v1276 = vadd.f32 %v154, %v1272
    %v1277 = vxor.u32 %v1275, 2147483648
    %v1278 = vxor.u32 %v1276, 2147483648
    %v1279 = vmul.f32 %v1277, 1.442695
    %v1280 = vpow.pop %v1279
    %v1281 = vmul.f32 %v1278, 1.442695
    %v1282 = vpow.pop %v1281
    %v1283 = vadd.f32 %v1280, 1.0
    %v1284 = vadd.f32 %v1282, 1.0
    %v1285 = vrcp.pop %v1283
    %v1286 = vmul.f32 1.0, %v1285
    %v1287 = vrcp.pop %v1284
    %v1288 = vmul.f32 1.0, %v1287
    %v1289 = vadd.f32 %v1248, %v461
    %v1291 = vrot.slane %v1289, 4
    %v1292 = vrot.slane %v1289, 5
    %v1295 = vmul.f32 %v1267, %v1291
    %v1296 = vmul.f32 %v1269, %v1292
    %v1297 = vadd.f32 %v223, %v1295
    %v1298 = vadd.f32 %v228, %v1296
    %v1299 = vtanh.pop %v1297
    %v1300 = vtanh.pop %v1298
    %v1301 = vsub.f32 1.0, %v1286
    %v1302 = vsub.f32 1.0, %v1288
    %v1303 = vmul.f32 %v1301, %v1299
    %v1304 = vmul.f32 %v1302, %v1300
    %v1305 = vrot.slane %v1102, 7
    %v1306 = vrot.slane %v1103, 7
    %v1309 = vmul.f32 %v1286, %v1305
    %v1310 = vmul.f32 %v1288, %v1306
    %v1311 = vadd.f32 %v1303, %v1309
    %v1312 = vadd.f32 %v1304, %v1310
    %v1315 = vrot.slane %v1311, 4
    %v1316 = vrot.slane %v1312, 3
    %v1317 = vsel %vm485, %v1316, %v1315
    %1319 = vmatprep.subr.mxu0 %v232
    %1320 = vmatpush1.msra.mxu0 %v231
    %1321 = vmatprep.subr.mxu0 %v235
    %1322 = vmatpush1.msra.mxu0 %v234
    %1323 = vmatprep.subr.mxu0 %v238
    %1324 = vmatpush1.msra.mxu0 %v237
    %1325 = vmatprep.subr.mxu0 %v241
    %1326 = vmatpush1.msra.mxu0 %v240
    %1327 = vmatprep.subr.mxu0 %v244
    %1328 = vmatpush1.msra.mxu0 %v243
    %1329 = vmatprep.subr.mxu0 %v247
    %1330 = vmatpush1.msra.mxu0 %v246
    %1331 = vmatprep.subr.mxu0 %v250
    %1332 = vmatpush1.msra.mxu0 %v249
    %1333 = vmatprep.subr.mxu0 %v253
    %1334 = vmatpush1.msra.mxu0 %v252
    %1335 = vmatprep.subr.mxu0 %v256
    %1336 = vmatpush1.msra.mxu0 %v255
    %1337 = vmatprep.subr.mxu0 %v259
    %1338 = vmatpush1.msra.mxu0 %v258
    %1339 = vmatprep.subr.mxu0 %v262
    %1340 = vmatpush1.msra.mxu0 %v261
    %1341 = vmatprep.subr.mxu0 %v265
    %1342 = vmatpush1.msra.mxu0 %v264
    %1343 = vmatprep.subr.mxu0 %v268
    %1344 = vmatpush1.msra.mxu0 %v267
    %1345 = vmatprep.subr.mxu0 %v271
    %1346 = vmatpush1.msra.mxu0 %v270
    %1347 = vmatprep.subr.mxu0 %v274
    %1348 = vmatpush1.msra.mxu0 %v273
    %1349 = vmatprep.subr.mxu0 %v277
    %1350 = vmatpush1.msra.mxu0 %v276
    %1351 = vmatprep.subr.mxu0 0.0
    %1352 = vmatpush1.msra.mxu0 0.0
    %1353 = vmatprep.subr.mxu0 0.0
    %1354 = vmatpush1.msra.mxu0 0.0
    %1355 = vmatprep.subr.mxu0 0.0
    %1356 = vmatpush1.msra.mxu0 0.0
    %1357 = vmatprep.subr.mxu0 0.0
    %1358 = vmatpush1.msra.mxu0 0.0
    %1359 = vmatprep.subr.mxu0 0.0
    %1360 = vmatpush1.msra.mxu0 0.0
    %1361 = vmatprep.subr.mxu0 0.0
    %1362 = vmatpush1.msra.mxu0 0.0
    %1363 = vmatprep.subr.mxu0 0.0
    %1364 = vmatpush1.msra.mxu0 0.0
    %1365 = vmatprep.subr.mxu0 0.0
    %1366 = vmatpush1.msra.mxu0 0.0
    %1367 = vmatprep.subr.mxu0 0.0
    %1368 = vmatpush1.msra.mxu0 0.0
    %1369 = vmatprep.subr.mxu0 0.0
    %1370 = vmatpush1.msra.mxu0 0.0
    %1371 = vmatprep.subr.mxu0 0.0
    %1372 = vmatpush1.msra.mxu0 0.0
    %1373 = vmatprep.subr.mxu0 0.0
    %1374 = vmatpush1.msra.mxu0 0.0
    %1375 = vmatprep.subr.mxu0 0.0
    %1376 = vmatpush1.msra.mxu0 0.0
    %1377 = vmatprep.subr.mxu0 0.0
    %1378 = vmatpush1.msra.mxu0 0.0
    %1379 = vmatprep.subr.mxu0 0.0
    %1380 = vmatpush1.msra.mxu0 0.0
    %1381 = vmatprep.subr.mxu0 0.0
    %1382 = vmatpush1.msra.mxu0 0.0
    %1383 = vmatprep.mubr.f32.mxu0 0.0
    %1384 = vmatmul.mubr.f32.gmra.mrb[0].mxu0 %v1317
    %v1385 = vpop.f32.mrb[0].mxu0
    %v1386 = vadd.f32 0.0, %v1385
    %v1387 = vpop.f32.mrb[0].mxu0
    %v1388 = vadd.f32 0.0, %v1387
    %1389 = vdwg.mxu0
    %1390 = vmatprep.subr.mxu0 0.0
    %1391 = vmatpush1.msra.mxu0 %v233
    %1392 = vmatprep.subr.mxu0 0.0
    %1393 = vmatpush1.msra.mxu0 %v236
    %1394 = vmatprep.subr.mxu0 0.0
    %1395 = vmatpush1.msra.mxu0 %v239
    %1396 = vmatprep.subr.mxu0 0.0
    %1397 = vmatpush1.msra.mxu0 %v242
    %1398 = vmatprep.subr.mxu0 0.0
    %1399 = vmatpush1.msra.mxu0 %v245
    %1400 = vmatprep.subr.mxu0 0.0
    %1401 = vmatpush1.msra.mxu0 %v248
    %1402 = vmatprep.subr.mxu0 0.0
    %1403 = vmatpush1.msra.mxu0 %v251
    %1404 = vmatprep.subr.mxu0 0.0
    %1405 = vmatpush1.msra.mxu0 %v254
    %1406 = vmatprep.subr.mxu0 0.0
    %1407 = vmatpush1.msra.mxu0 %v257
    %1408 = vmatprep.subr.mxu0 0.0
    %1409 = vmatpush1.msra.mxu0 %v260
    %1410 = vmatprep.subr.mxu0 0.0
    %1411 = vmatpush1.msra.mxu0 %v263
    %1412 = vmatprep.subr.mxu0 0.0
    %1413 = vmatpush1.msra.mxu0 %v266
    %1414 = vmatprep.subr.mxu0 0.0
    %1415 = vmatpush1.msra.mxu0 %v269
    %1416 = vmatprep.subr.mxu0 0.0
    %1417 = vmatpush1.msra.mxu0 %v272
    %1418 = vmatprep.subr.mxu0 0.0
    %1419 = vmatpush1.msra.mxu0 %v275
    %1420 = vmatprep.subr.mxu0 0.0
    %1421 = vmatpush1.msra.mxu0 %v278
    %1422 = vmatprep.subr.mxu0 0.0
    %1423 = vmatpush1.msra.mxu0 0.0
    %1424 = vmatprep.subr.mxu0 0.0
    %1425 = vmatpush1.msra.mxu0 0.0
    %1426 = vmatprep.subr.mxu0 0.0
    %1427 = vmatpush1.msra.mxu0 0.0
    %1428 = vmatprep.subr.mxu0 0.0
    %1429 = vmatpush1.msra.mxu0 0.0
    %1430 = vmatprep.subr.mxu0 0.0
    %1431 = vmatpush1.msra.mxu0 0.0
    %1432 = vmatprep.subr.mxu0 0.0
    %1433 = vmatpush1.msra.mxu0 0.0
    %1434 = vmatprep.subr.mxu0 0.0
    %1435 = vmatpush1.msra.mxu0 0.0
    %1436 = vmatprep.subr.mxu0 0.0
    %1437 = vmatpush1.msra.mxu0 0.0
    %1438 = vmatprep.subr.mxu0 0.0
    %1439 = vmatpush1.msra.mxu0 0.0
    %1440 = vmatprep.subr.mxu0 0.0
    %1441 = vmatpush1.msra.mxu0 0.0
    %1442 = vmatprep.subr.mxu0 0.0
    %1443 = vmatpush1.msra.mxu0 0.0
    %1444 = vmatprep.subr.mxu0 0.0
    %1445 = vmatpush1.msra.mxu0 0.0
    %1446 = vmatprep.subr.mxu0 0.0
    %1447 = vmatpush1.msra.mxu0 0.0
    %1448 = vmatprep.subr.mxu0 0.0
    %1449 = vmatpush1.msra.mxu0 0.0
    %1450 = vmatprep.subr.mxu0 0.0
    %1451 = vmatpush1.msra.mxu0 0.0
    %1452 = vmatprep.subr.mxu0 0.0
    %1453 = vmatpush1.msra.mxu0 0.0
    %1454 = vmatprep.mubr.f32.mxu0 0.0
    %1455 = vmatmul.mubr.f32.gmra.mrb[0].mxu0 %v1317
    %v1456 = vpop.f32.mrb[0].mxu0
    %v1457 = vadd.f32 0.0, %v1456
    %v1458 = vpop.f32.mrb[0].mxu0
    %1459 = vdwg.mxu0
    %v1461 = vrot.slane %v1386, 3
    %v1462 = vrot.slane %v1386, 4
    %v1465 = vadd.f32 %v146, %v1461
    %v1466 = vadd.f32 %v152, %v1462
    %v1467 = vxor.u32 %v1465, 2147483648
    %v1468 = vxor.u32 %v1466, 2147483648
    %v1469 = vmul.f32 %v1467, 1.442695
    %v1470 = vpow.pop %v1469
    %v1471 = vmul.f32 %v1468, 1.442695
    %v1472 = vpow.pop %v1471
    %v1473 = vadd.f32 %v1470, 1.0
    %v1474 = vadd.f32 %v1472, 1.0
    %v1475 = vrcp.pop %v1473
    %v1476 = vmul.f32 1.0, %v1475
    %v1477 = vrcp.pop %v1474
    %v1478 = vmul.f32 1.0, %v1477
    %v1480 = vrot.slane %v1388, 3
    %v1481 = vrot.slane %v1388, 4
    %v1484 = vadd.f32 %v148, %v1480
    %v1485 = vadd.f32 %v154, %v1481
    %v1486 = vxor.u32 %v1484, 2147483648
    %v1487 = vxor.u32 %v1485, 2147483648
    %v1488 = vmul.f32 %v1486, 1.442695
    %v1489 = vpow.pop %v1488
    %v1490 = vmul.f32 %v1487, 1.442695
    %v1491 = vpow.pop %v1490
    %v1492 = vadd.f32 %v1489, 1.0
    %v1493 = vadd.f32 %v1491, 1.0
    %v1494 = vrcp.pop %v1492
    %v1495 = vmul.f32 1.0, %v1494
    %v1496 = vrcp.pop %v1493
    %v1497 = vmul.f32 1.0, %v1496
    %v1498 = vadd.f32 %v1457, %v461
    %v1500 = vrot.slane %v1498, 3
    %v1501 = vrot.slane %v1498, 4
    %v1504 = vmul.f32 %v1476, %v1500
    %v1505 = vmul.f32 %v1478, %v1501
    %v1506 = vadd.f32 %v223, %v1504
    %v1507 = vadd.f32 %v228, %v1505
    %v1508 = vtanh.pop %v1506
    %v1509 = vtanh.pop %v1507
    %v1510 = vsub.f32 1.0, %v1495
    %v1511 = vsub.f32 1.0, %v1497
    %v1512 = vmul.f32 %v1510, %v1508
    %v1513 = vmul.f32 %v1511, %v1509
    %v1514 = vrot.slane %v1311, 7
    %v1515 = vrot.slane %v1312, 7
    %v1518 = vmul.f32 %v1495, %v1514
    %v1519 = vmul.f32 %v1497, %v1515
    %v1520 = vadd.f32 %v1512, %v1518
    %v1521 = vadd.f32 %v1513, %v1519
    %v1524 = vrot.slane %v1520, 5
    %v1525 = vrot.slane %v1521, 4
    %v1526 = vsel %vm485, %v1525, %v1524
    %1528 = vmatprep.subr.mxu0 %v232
    %1529 = vmatpush1.msra.mxu0 %v231
    %1530 = vmatprep.subr.mxu0 %v235
    %1531 = vmatpush1.msra.mxu0 %v234
    %1532 = vmatprep.subr.mxu0 %v238
    %1533 = vmatpush1.msra.mxu0 %v237
    %1534 = vmatprep.subr.mxu0 %v241
    %1535 = vmatpush1.msra.mxu0 %v240
    %1536 = vmatprep.subr.mxu0 %v244
    %1537 = vmatpush1.msra.mxu0 %v243
    %1538 = vmatprep.subr.mxu0 %v247
    %1539 = vmatpush1.msra.mxu0 %v246
    %1540 = vmatprep.subr.mxu0 %v250
    %1541 = vmatpush1.msra.mxu0 %v249
    %1542 = vmatprep.subr.mxu0 %v253
    %1543 = vmatpush1.msra.mxu0 %v252
    %1544 = vmatprep.subr.mxu0 %v256
    %1545 = vmatpush1.msra.mxu0 %v255
    %1546 = vmatprep.subr.mxu0 %v259
    %1547 = vmatpush1.msra.mxu0 %v258
    %1548 = vmatprep.subr.mxu0 %v262
    %1549 = vmatpush1.msra.mxu0 %v261
    %1550 = vmatprep.subr.mxu0 %v265
    %1551 = vmatpush1.msra.mxu0 %v264
    %1552 = vmatprep.subr.mxu0 %v268
    %1553 = vmatpush1.msra.mxu0 %v267
    %1554 = vmatprep.subr.mxu0 %v271
    %1555 = vmatpush1.msra.mxu0 %v270
    %1556 = vmatprep.subr.mxu0 %v274
    %1557 = vmatpush1.msra.mxu0 %v273
    %1558 = vmatprep.subr.mxu0 %v277
    %1559 = vmatpush1.msra.mxu0 %v276
    %1560 = vmatprep.subr.mxu0 0.0
    %1561 = vmatpush1.msra.mxu0 0.0
    %1562 = vmatprep.subr.mxu0 0.0
    %1563 = vmatpush1.msra.mxu0 0.0
    %1564 = vmatprep.subr.mxu0 0.0
    %1565 = vmatpush1.msra.mxu0 0.0
    %1566 = vmatprep.subr.mxu0 0.0
    %1567 = vmatpush1.msra.mxu0 0.0
    %1568 = vmatprep.subr.mxu0 0.0
    %1569 = vmatpush1.msra.mxu0 0.0
    %1570 = vmatprep.subr.mxu0 0.0
    %1571 = vmatpush1.msra.mxu0 0.0
    %1572 = vmatprep.subr.mxu0 0.0
    %1573 = vmatpush1.msra.mxu0 0.0
    %1574 = vmatprep.subr.mxu0 0.0
    %1575 = vmatpush1.msra.mxu0 0.0
    %1576 = vmatprep.subr.mxu0 0.0
    %1577 = vmatpush1.msra.mxu0 0.0
    %1578 = vmatprep.subr.mxu0 0.0
    %1579 = vmatpush1.msra.mxu0 0.0
    %1580 = vmatprep.subr.mxu0 0.0
    %1581 = vmatpush1.msra.mxu0 0.0
    %1582 = vmatprep.subr.mxu0 0.0
    %1583 = vmatpush1.msra.mxu0 0.0
    %1584 = vmatprep.subr.mxu0 0.0
    %1585 = vmatpush1.msra.mxu0 0.0
    %1586 = vmatprep.subr.mxu0 0.0
    %1587 = vmatpush1.msra.mxu0 0.0
    %1588 = vmatprep.subr.mxu0 0.0
    %1589 = vmatpush1.msra.mxu0 0.0
    %1590 = vmatprep.subr.mxu0 0.0
    %1591 = vmatpush1.msra.mxu0 0.0
    %1592 = vmatprep.mubr.f32.mxu0 0.0
    %1593 = vmatmul.mubr.f32.gmra.mrb[0].mxu0 %v1526
    %v1594 = vpop.f32.mrb[0].mxu0
    %v1595 = vadd.f32 0.0, %v1594
    %v1596 = vpop.f32.mrb[0].mxu0
    %v1597 = vadd.f32 0.0, %v1596
    %1598 = vdwg.mxu0
    %1599 = vmatprep.subr.mxu0 0.0
    %1600 = vmatpush1.msra.mxu0 %v233
    %1601 = vmatprep.subr.mxu0 0.0
    %1602 = vmatpush1.msra.mxu0 %v236
    %1603 = vmatprep.subr.mxu0 0.0
    %1604 = vmatpush1.msra.mxu0 %v239
    %1605 = vmatprep.subr.mxu0 0.0
    %1606 = vmatpush1.msra.mxu0 %v242
    %1607 = vmatprep.subr.mxu0 0.0
    %1608 = vmatpush1.msra.mxu0 %v245
    %1609 = vmatprep.subr.mxu0 0.0
    %1610 = vmatpush1.msra.mxu0 %v248
    %1611 = vmatprep.subr.mxu0 0.0
    %1612 = vmatpush1.msra.mxu0 %v251
    %1613 = vmatprep.subr.mxu0 0.0
    %1614 = vmatpush1.msra.mxu0 %v254
    %1615 = vmatprep.subr.mxu0 0.0
    %1616 = vmatpush1.msra.mxu0 %v257
    %1617 = vmatprep.subr.mxu0 0.0
    %1618 = vmatpush1.msra.mxu0 %v260
    %1619 = vmatprep.subr.mxu0 0.0
    %1620 = vmatpush1.msra.mxu0 %v263
    %1621 = vmatprep.subr.mxu0 0.0
    %1622 = vmatpush1.msra.mxu0 %v266
    %1623 = vmatprep.subr.mxu0 0.0
    %1624 = vmatpush1.msra.mxu0 %v269
    %1625 = vmatprep.subr.mxu0 0.0
    %1626 = vmatpush1.msra.mxu0 %v272
    %1627 = vmatprep.subr.mxu0 0.0
    %1628 = vmatpush1.msra.mxu0 %v275
    %1629 = vmatprep.subr.mxu0 0.0
    %1630 = vmatpush1.msra.mxu0 %v278
    %1631 = vmatprep.subr.mxu0 0.0
    %1632 = vmatpush1.msra.mxu0 0.0
    %1633 = vmatprep.subr.mxu0 0.0
    %1634 = vmatpush1.msra.mxu0 0.0
    %1635 = vmatprep.subr.mxu0 0.0
    %1636 = vmatpush1.msra.mxu0 0.0
    %1637 = vmatprep.subr.mxu0 0.0
    %1638 = vmatpush1.msra.mxu0 0.0
    %1639 = vmatprep.subr.mxu0 0.0
    %1640 = vmatpush1.msra.mxu0 0.0
    %1641 = vmatprep.subr.mxu0 0.0
    %1642 = vmatpush1.msra.mxu0 0.0
    %1643 = vmatprep.subr.mxu0 0.0
    %1644 = vmatpush1.msra.mxu0 0.0
    %1645 = vmatprep.subr.mxu0 0.0
    %1646 = vmatpush1.msra.mxu0 0.0
    %1647 = vmatprep.subr.mxu0 0.0
    %1648 = vmatpush1.msra.mxu0 0.0
    %1649 = vmatprep.subr.mxu0 0.0
    %1650 = vmatpush1.msra.mxu0 0.0
    %1651 = vmatprep.subr.mxu0 0.0
    %1652 = vmatpush1.msra.mxu0 0.0
    %1653 = vmatprep.subr.mxu0 0.0
    %1654 = vmatpush1.msra.mxu0 0.0
    %1655 = vmatprep.subr.mxu0 0.0
    %1656 = vmatpush1.msra.mxu0 0.0
    %1657 = vmatprep.subr.mxu0 0.0
    %1658 = vmatpush1.msra.mxu0 0.0
    %1659 = vmatprep.subr.mxu0 0.0
    %1660 = vmatpush1.msra.mxu0 0.0
    %1661 = vmatprep.subr.mxu0 0.0
    %1662 = vmatpush1.msra.mxu0 0.0
    %1663 = vmatprep.mubr.f32.mxu0 0.0
    %1664 = vmatmul.mubr.f32.gmra.mrb[0].mxu0 %v1526
    %v1665 = vpop.f32.mrb[0].mxu0
    %v1666 = vadd.f32 0.0, %v1665
    %v1667 = vpop.f32.mrb[0].mxu0
    %1668 = vdwg.mxu0
    %v1670 = vrot.slane %v1595, 2
    %v1671 = vrot.slane %v1595, 3
    %v1674 = vadd.f32 %v146, %v1670
    %v1675 = vadd.f32 %v152, %v1671
    %v1676 = vxor.u32 %v1674, 2147483648
    %v1677 = vxor.u32 %v1675, 2147483648
    %v1678 = vmul.f32 %v1676, 1.442695
    %v1679 = vpow.pop %v1678
    %v1680 = vmul.f32 %v1677, 1.442695
    %v1681 = vpow.pop %v1680
    %v1682 = vadd.f32 %v1679, 1.0
    %v1683 = vadd.f32 %v1681, 1.0
    %v1684 = vrcp.pop %v1682
    %v1685 = vmul.f32 1.0, %v1684
    %v1686 = vrcp.pop %v1683
    %v1687 = vmul.f32 1.0, %v1686
    %v1689 = vrot.slane %v1597, 2
    %v1690 = vrot.slane %v1597, 3
    %v1693 = vadd.f32 %v148, %v1689
    %v1694 = vadd.f32 %v154, %v1690
    %v1695 = vxor.u32 %v1693, 2147483648
    %v1696 = vxor.u32 %v1694, 2147483648
    %v1697 = vmul.f32 %v1695, 1.442695
    %v1698 = vpow.pop %v1697
    %v1699 = vmul.f32 %v1696, 1.442695
    %v1700 = vpow.pop %v1699
    %v1701 = vadd.f32 %v1698, 1.0
    %v1702 = vadd.f32 %v1700, 1.0
    %v1703 = vrcp.pop %v1701
    %v1704 = vmul.f32 1.0, %v1703
    %v1705 = vrcp.pop %v1702
    %v1706 = vmul.f32 1.0, %v1705
    %v1707 = vadd.f32 %v1666, %v461
    %v1709 = vrot.slane %v1707, 2
    %v1710 = vrot.slane %v1707, 3
    %v1713 = vmul.f32 %v1685, %v1709
    %v1714 = vmul.f32 %v1687, %v1710
    %v1715 = vadd.f32 %v223, %v1713
    %v1716 = vadd.f32 %v228, %v1714
    %v1717 = vtanh.pop %v1715
    %v1718 = vtanh.pop %v1716
    %v1719 = vsub.f32 1.0, %v1704
    %v1720 = vsub.f32 1.0, %v1706
    %v1721 = vmul.f32 %v1719, %v1717
    %v1722 = vmul.f32 %v1720, %v1718
    %v1723 = vrot.slane %v1520, 7
    %v1724 = vrot.slane %v1521, 7
    %v1727 = vmul.f32 %v1704, %v1723
    %v1728 = vmul.f32 %v1706, %v1724
    %v1729 = vadd.f32 %v1721, %v1727
    %v1730 = vadd.f32 %v1722, %v1728
    %v1733 = vrot.slane %v1729, 6
    %v1734 = vrot.slane %v1730, 5
    %v1735 = vsel %vm485, %v1734, %v1733
    %1737 = vmatprep.subr.mxu0 %v232
    %1738 = vmatpush1.msra.mxu0 %v231
    %1739 = vmatprep.subr.mxu0 %v235
    %1740 = vmatpush1.msra.mxu0 %v234
    %1741 = vmatprep.subr.mxu0 %v238
    %1742 = vmatpush1.msra.mxu0 %v237
    %1743 = vmatprep.subr.mxu0 %v241
    %1744 = vmatpush1.msra.mxu0 %v240
    %1745 = vmatprep.subr.mxu0 %v244
    %1746 = vmatpush1.msra.mxu0 %v243
    %1747 = vmatprep.subr.mxu0 %v247
    %1748 = vmatpush1.msra.mxu0 %v246
    %1749 = vmatprep.subr.mxu0 %v250
    %1750 = vmatpush1.msra.mxu0 %v249
    %1751 = vmatprep.subr.mxu0 %v253
    %1752 = vmatpush1.msra.mxu0 %v252
    %1753 = vmatprep.subr.mxu0 %v256
    %1754 = vmatpush1.msra.mxu0 %v255
    %1755 = vmatprep.subr.mxu0 %v259
    %1756 = vmatpush1.msra.mxu0 %v258
    %1757 = vmatprep.subr.mxu0 %v262
    %1758 = vmatpush1.msra.mxu0 %v261
    %1759 = vmatprep.subr.mxu0 %v265
    %1760 = vmatpush1.msra.mxu0 %v264
    %1761 = vmatprep.subr.mxu0 %v268
    %1762 = vmatpush1.msra.mxu0 %v267
    %1763 = vmatprep.subr.mxu0 %v271
    %1764 = vmatpush1.msra.mxu0 %v270
    %1765 = vmatprep.subr.mxu0 %v274
    %1766 = vmatpush1.msra.mxu0 %v273
    %1767 = vmatprep.subr.mxu0 %v277
    %1768 = vmatpush1.msra.mxu0 %v276
    %1769 = vmatprep.subr.mxu0 0.0
    %1770 = vmatpush1.msra.mxu0 0.0
    %1771 = vmatprep.subr.mxu0 0.0
    %1772 = vmatpush1.msra.mxu0 0.0
    %1773 = vmatprep.subr.mxu0 0.0
    %1774 = vmatpush1.msra.mxu0 0.0
    %1775 = vmatprep.subr.mxu0 0.0
    %1776 = vmatpush1.msra.mxu0 0.0
    %1777 = vmatprep.subr.mxu0 0.0
    %1778 = vmatpush1.msra.mxu0 0.0
    %1779 = vmatprep.subr.mxu0 0.0
    %1780 = vmatpush1.msra.mxu0 0.0
    %1781 = vmatprep.subr.mxu0 0.0
    %1782 = vmatpush1.msra.mxu0 0.0
    %1783 = vmatprep.subr.mxu0 0.0
    %1784 = vmatpush1.msra.mxu0 0.0
    %1785 = vmatprep.subr.mxu0 0.0
    %1786 = vmatpush1.msra.mxu0 0.0
    %1787 = vmatprep.subr.mxu0 0.0
    %1788 = vmatpush1.msra.mxu0 0.0
    %1789 = vmatprep.subr.mxu0 0.0
    %1790 = vmatpush1.msra.mxu0 0.0
    %1791 = vmatprep.subr.mxu0 0.0
    %1792 = vmatpush1.msra.mxu0 0.0
    %1793 = vmatprep.subr.mxu0 0.0
    %1794 = vmatpush1.msra.mxu0 0.0
    %1795 = vmatprep.subr.mxu0 0.0
    %1796 = vmatpush1.msra.mxu0 0.0
    %1797 = vmatprep.subr.mxu0 0.0
    %1798 = vmatpush1.msra.mxu0 0.0
    %1799 = vmatprep.subr.mxu0 0.0
    %1800 = vmatpush1.msra.mxu0 0.0
    %1801 = vmatprep.mubr.f32.mxu0 0.0
    %1802 = vmatmul.mubr.f32.gmra.mrb[0].mxu0 %v1735
    %v1803 = vpop.f32.mrb[0].mxu0
    %v1804 = vadd.f32 0.0, %v1803
    %v1805 = vpop.f32.mrb[0].mxu0
    %v1806 = vadd.f32 0.0, %v1805
    %1807 = vdwg.mxu0
    %1808 = vmatprep.subr.mxu0 0.0
    %1809 = vmatpush1.msra.mxu0 %v233
    %1810 = vmatprep.subr.mxu0 0.0
    %1811 = vmatpush1.msra.mxu0 %v236
    %1812 = vmatprep.subr.mxu0 0.0
    %1813 = vmatpush1.msra.mxu0 %v239
    %1814 = vmatprep.subr.mxu0 0.0
    %1815 = vmatpush1.msra.mxu0 %v242
    %1816 = vmatprep.subr.mxu0 0.0
    %1817 = vmatpush1.msra.mxu0 %v245
    %1818 = vmatprep.subr.mxu0 0.0
    %1819 = vmatpush1.msra.mxu0 %v248
    %1820 = vmatprep.subr.mxu0 0.0
    %1821 = vmatpush1.msra.mxu0 %v251
    %1822 = vmatprep.subr.mxu0 0.0
    %1823 = vmatpush1.msra.mxu0 %v254
    %1824 = vmatprep.subr.mxu0 0.0
    %1825 = vmatpush1.msra.mxu0 %v257
    %1826 = vmatprep.subr.mxu0 0.0
    %1827 = vmatpush1.msra.mxu0 %v260
    %1828 = vmatprep.subr.mxu0 0.0
    %1829 = vmatpush1.msra.mxu0 %v263
    %1830 = vmatprep.subr.mxu0 0.0
    %1831 = vmatpush1.msra.mxu0 %v266
    %1832 = vmatprep.subr.mxu0 0.0
    %1833 = vmatpush1.msra.mxu0 %v269
    %1834 = vmatprep.subr.mxu0 0.0
    %1835 = vmatpush1.msra.mxu0 %v272
    %1836 = vmatprep.subr.mxu0 0.0
    %1837 = vmatpush1.msra.mxu0 %v275
    %1838 = vmatprep.subr.mxu0 0.0
    %1839 = vmatpush1.msra.mxu0 %v278
    %1840 = vmatprep.subr.mxu0 0.0
    %1841 = vmatpush1.msra.mxu0 0.0
    %1842 = vmatprep.subr.mxu0 0.0
    %1843 = vmatpush1.msra.mxu0 0.0
    %1844 = vmatprep.subr.mxu0 0.0
    %1845 = vmatpush1.msra.mxu0 0.0
    %1846 = vmatprep.subr.mxu0 0.0
    %1847 = vmatpush1.msra.mxu0 0.0
    %1848 = vmatprep.subr.mxu0 0.0
    %1849 = vmatpush1.msra.mxu0 0.0
    %1850 = vmatprep.subr.mxu0 0.0
    %1851 = vmatpush1.msra.mxu0 0.0
    %1852 = vmatprep.subr.mxu0 0.0
    %1853 = vmatpush1.msra.mxu0 0.0
    %1854 = vmatprep.subr.mxu0 0.0
    %1855 = vmatpush1.msra.mxu0 0.0
    %1856 = vmatprep.subr.mxu0 0.0
    %1857 = vmatpush1.msra.mxu0 0.0
    %1858 = vmatprep.subr.mxu0 0.0
    %1859 = vmatpush1.msra.mxu0 0.0
    %1860 = vmatprep.subr.mxu0 0.0
    %1861 = vmatpush1.msra.mxu0 0.0
    %1862 = vmatprep.subr.mxu0 0.0
    %1863 = vmatpush1.msra.mxu0 0.0
    %1864 = vmatprep.subr.mxu0 0.0
    %1865 = vmatpush1.msra.mxu0 0.0
    %1866 = vmatprep.subr.mxu0 0.0
    %1867 = vmatpush1.msra.mxu0 0.0
    %1868 = vmatprep.subr.mxu0 0.0
    %1869 = vmatpush1.msra.mxu0 0.0
    %1870 = vmatprep.subr.mxu0 0.0
    %1871 = vmatpush1.msra.mxu0 0.0
    %1872 = vmatprep.mubr.f32.mxu0 0.0
    %1873 = vmatmul.mubr.f32.gmra.mrb[0].mxu0 %v1735
    %v1874 = vpop.f32.mrb[0].mxu0
    %v1875 = vadd.f32 0.0, %v1874
    %v1876 = vpop.f32.mrb[0].mxu0
    %1877 = vdwg.mxu0
    %v1879 = vrot.slane %v1804, 1
    %v1880 = vrot.slane %v1804, 2
    %v1883 = vadd.f32 %v146, %v1879
    %v1884 = vadd.f32 %v152, %v1880
    %v1885 = vxor.u32 %v1883, 2147483648
    %v1886 = vxor.u32 %v1884, 2147483648
    %v1887 = vmul.f32 %v1885, 1.442695
    %v1888 = vpow.pop %v1887
    %v1889 = vmul.f32 %v1886, 1.442695
    %v1890 = vpow.pop %v1889
    %v1891 = vadd.f32 %v1888, 1.0
    %v1892 = vadd.f32 %v1890, 1.0
    %v1893 = vrcp.pop %v1891
    %v1894 = vmul.f32 1.0, %v1893
    %v1895 = vrcp.pop %v1892
    %v1896 = vmul.f32 1.0, %v1895
    %v1898 = vrot.slane %v1806, 1
    %v1899 = vrot.slane %v1806, 2
    %v1902 = vadd.f32 %v148, %v1898
    %v1903 = vadd.f32 %v154, %v1899
    %v1904 = vxor.u32 %v1902, 2147483648
    %v1905 = vxor.u32 %v1903, 2147483648
    %v1906 = vmul.f32 %v1904, 1.442695
    %v1907 = vpow.pop %v1906
    %v1908 = vmul.f32 %v1905, 1.442695
    %v1909 = vpow.pop %v1908
    %v1910 = vadd.f32 %v1907, 1.0
    %v1911 = vadd.f32 %v1909, 1.0
    %v1912 = vrcp.pop %v1910
    %v1913 = vmul.f32 1.0, %v1912
    %v1914 = vrcp.pop %v1911
    %v1915 = vmul.f32 1.0, %v1914
    %v1916 = vadd.f32 %v1875, %v461
    %v1918 = vrot.slane %v1916, 1
    %v1919 = vrot.slane %v1916, 2
    %v1922 = vmul.f32 %v1894, %v1918
    %v1923 = vmul.f32 %v1896, %v1919
    %v1924 = vadd.f32 %v223, %v1922
    %v1925 = vadd.f32 %v228, %v1923
    %v1926 = vtanh.pop %v1924
    %v1927 = vtanh.pop %v1925
    %v1928 = vsub.f32 1.0, %v1913
    %v1929 = vsub.f32 1.0, %v1915
    %v1930 = vmul.f32 %v1928, %v1926
    %v1931 = vmul.f32 %v1929, %v1927
    %v1932 = vrot.slane %v1729, 7
    %v1933 = vrot.slane %v1730, 7
    %v1936 = vmul.f32 %v1913, %v1932
    %v1937 = vmul.f32 %v1915, %v1933
    %v1938 = vadd.f32 %v1930, %v1936
    %v1939 = vadd.f32 %v1931, %v1937
    %v1940 = vld [vmem:[%s1] sm:$0x3]
    %v1941 = vld [vmem:[%s6] sm:$0xff]
    %v1942 = vld [vmem:[%s6 + $0x8] sm:$0xff]
    %v1943 = vld [vmem:[%s6 + $0x10] sm:$0xff]
    %v1944 = vld [vmem:[%s6 + $0x18] sm:$0xff]
    %v1945 = vld [vmem:[%s7] sm:$0xff]
    %v1946 = vld [vmem:[%s7 + $0x8] sm:$0xff]
    %v1947 = vld [vmem:[%s7 + $0x10] sm:$0xff]
    %v1948 = vld [vmem:[%s7 + $0x18] sm:$0xff]
    %v1949 = vld [vmem:[%s7 + $0x20] sm:$0xff]
    %v1950 = vld [vmem:[%s7 + $0x28] sm:$0xff]
    %v1951 = vld [vmem:[%s7 + $0x30] sm:$0xff]
    %v1952 = vld [vmem:[%s7 + $0x38] sm:$0xff]
    %v1953 = vld [vmem:[%s7 + $0x40] sm:$0xff]
    %v1954 = vld [vmem:[%s7 + $0x48] sm:$0xff]
    %v1955 = vld [vmem:[%s7 + $0x50] sm:$0xff]
    %v1956 = vld [vmem:[%s7 + $0x58] sm:$0xff]
    %v1957 = vld [vmem:[%s7 + $0x60] sm:$0xff]
    %v1958 = vld [vmem:[%s7 + $0x68] sm:$0xff]
    %v1959 = vld [vmem:[%s7 + $0x70] sm:$0xff]
    %v1960 = vld [vmem:[%s7 + $0x78] sm:$0xff]
    %v1963 = vrot.slane %v1938, 7
    %v1964 = vrot.slane %v1939, 6
    %v1965 = vsel %vm485, %v1964, %v1963
    %1967 = vmatprep.subr.mxu0 0.0
    %1968 = vmatpush1.msra.mxu0 %v1945
    %1969 = vmatprep.subr.mxu0 0.0
    %1970 = vmatpush1.msra.mxu0 %v1946
    %1971 = vmatprep.subr.mxu0 0.0
    %1972 = vmatpush1.msra.mxu0 %v1947
    %1973 = vmatprep.subr.mxu0 0.0
    %1974 = vmatpush1.msra.mxu0 %v1948
    %1975 = vmatprep.subr.mxu0 0.0
    %1976 = vmatpush1.msra.mxu0 %v1949
    %1977 = vmatprep.subr.mxu0 0.0
    %1978 = vmatpush1.msra.mxu0 %v1950
    %1979 = vmatprep.subr.mxu0 0.0
    %1980 = vmatpush1.msra.mxu0 %v1951
    %1981 = vmatprep.subr.mxu0 0.0
    %1982 = vmatpush1.msra.mxu0 %v1952
    %1983 = vmatprep.subr.mxu0 0.0
    %1984 = vmatpush1.msra.mxu0 %v1953
    %1985 = vmatprep.subr.mxu0 0.0
    %1986 = vmatpush1.msra.mxu0 %v1954
    %1987 = vmatprep.subr.mxu0 0.0
    %1988 = vmatpush1.msra.mxu0 %v1955
    %1989 = vmatprep.subr.mxu0 0.0
    %1990 = vmatpush1.msra.mxu0 %v1956
    %1991 = vmatprep.subr.mxu0 0.0
    %1992 = vmatpush1.msra.mxu0 %v1957
    %1993 = vmatprep.subr.mxu0 0.0
    %1994 = vmatpush1.msra.mxu0 %v1958
    %1995 = vmatprep.subr.mxu0 0.0
    %1996 = vmatpush1.msra.mxu0 %v1959
    %1997 = vmatprep.subr.mxu0 0.0
    %1998 = vmatpush1.msra.mxu0 %v1960
    %1999 = vmatprep.subr.mxu0 0.0
    %2000 = vmatpush1.msra.mxu0 0.0
    %2001 = vmatprep.subr.mxu0 0.0
    %2002 = vmatpush1.msra.mxu0 0.0
    %2003 = vmatprep.subr.mxu0 0.0
    %2004 = vmatpush1.msra.mxu0 0.0
    %2005 = vmatprep.subr.mxu0 0.0
    %2006 = vmatpush1.msra.mxu0 0.0
    %2007 = vmatprep.subr.mxu0 0.0
    %2008 = vmatpush1.msra.mxu0 0.0
    %2009 = vmatprep.subr.mxu0 0.0
    %2010 = vmatpush1.msra.mxu0 0.0
    %2011 = vmatprep.subr.mxu0 0.0
    %2012 = vmatpush1.msra.mxu0 0.0
    %2013 = vmatprep.subr.mxu0 0.0
    %2014 = vmatpush1.msra.mxu0 0.0
    %2015 = vmatprep.subr.mxu0 0.0
    %2016 = vmatpush1.msra.mxu0 0.0
    %2017 = vmatprep.subr.mxu0 0.0
    %2018 = vmatpush1.msra.mxu0 0.0
    %2019 = vmatprep.subr.mxu0 0.0
    %2020 = vmatpush1.msra.mxu0 0.0
    %2021 = vmatprep.subr.mxu0 0.0
    %2022 = vmatpush1.msra.mxu0 0.0
    %2023 = vmatprep.subr.mxu0 0.0
    %2024 = vmatpush1.msra.mxu0 0.0
    %2025 = vmatprep.subr.mxu0 0.0
    %2026 = vmatpush1.msra.mxu0 0.0
    %2027 = vmatprep.subr.mxu0 0.0
    %2028 = vmatpush1.msra.mxu0 0.0
    %2029 = vmatprep.subr.mxu0 0.0
    %2030 = vmatpush1.msra.mxu0 0.0
    %2031 = vmatprep.mubr.f32.mxu0 0.0
    %2032 = vmatmul.mubr.f32.gmra.mrb[0].mxu0 %v1965
    %v2033 = vpop.f32.mrb[0].mxu0
    %v2034 = vadd.f32 0.0, %v2033
    %v2035 = vpop.f32.mrb[0].mxu0
    %2036 = vdwg.mxu0
    %vm2037 = vcmask 261120
    %v2039 = vsel %vm2037, %v1940, 0
    %2041 = vmatprep.subr.mxu0 0.0
    %2042 = vmatpush1.msra.mxu0 %v1941
    %2043 = vmatprep.subr.mxu0 0.0
    %2044 = vmatpush1.msra.mxu0 %v1942
    %2045 = vmatprep.subr.mxu0 0.0
    %2046 = vmatpush1.msra.mxu0 %v1943
    %2047 = vmatprep.subr.mxu0 0.0
    %2048 = vmatpush1.msra.mxu0 %v1944
    %2049 = vmatprep.subr.mxu0 0.0
    %2050 = vmatpush1.msra.mxu0 0.0
    %2051 = vmatprep.subr.mxu0 0.0
    %2052 = vmatpush1.msra.mxu0 0.0
    %2053 = vmatprep.subr.mxu0 0.0
    %2054 = vmatpush1.msra.mxu0 0.0
    %2055 = vmatprep.subr.mxu0 0.0
    %2056 = vmatpush1.msra.mxu0 0.0
    %2057 = vmatprep.subr.mxu0 0.0
    %2058 = vmatpush1.msra.mxu0 0.0
    %2059 = vmatprep.subr.mxu0 0.0
    %2060 = vmatpush1.msra.mxu0 0.0
    %2061 = vmatprep.subr.mxu0 0.0
    %2062 = vmatpush1.msra.mxu0 0.0
    %2063 = vmatprep.subr.mxu0 0.0
    %2064 = vmatpush1.msra.mxu0 0.0
    %2065 = vmatprep.subr.mxu0 0.0
    %2066 = vmatpush1.msra.mxu0 0.0
    %2067 = vmatprep.subr.mxu0 0.0
    %2068 = vmatpush1.msra.mxu0 0.0
    %2069 = vmatprep.subr.mxu0 0.0
    %2070 = vmatpush1.msra.mxu0 0.0
    %2071 = vmatprep.subr.mxu0 0.0
    %2072 = vmatpush1.msra.mxu0 0.0
    %2073 = vmatprep.subr.mxu0 0.0
    %2074 = vmatpush1.msra.mxu0 0.0
    %2075 = vmatprep.subr.mxu0 0.0
    %2076 = vmatpush1.msra.mxu0 0.0
    %2077 = vmatprep.subr.mxu0 0.0
    %2078 = vmatpush1.msra.mxu0 0.0
    %2079 = vmatprep.subr.mxu0 0.0
    %2080 = vmatpush1.msra.mxu0 0.0
    %2081 = vmatprep.subr.mxu0 0.0
    %2082 = vmatpush1.msra.mxu0 0.0
    %2083 = vmatprep.subr.mxu0 0.0
    %2084 = vmatpush1.msra.mxu0 0.0
    %2085 = vmatprep.subr.mxu0 0.0
    %2086 = vmatpush1.msra.mxu0 0.0
    %2087 = vmatprep.subr.mxu0 0.0
    %2088 = vmatpush1.msra.mxu0 0.0
    %2089 = vmatprep.subr.mxu0 0.0
    %2090 = vmatpush1.msra.mxu0 0.0
    %2091 = vmatprep.subr.mxu0 0.0
    %2092 = vmatpush1.msra.mxu0 0.0
    %2093 = vmatprep.subr.mxu0 0.0
    %2094 = vmatpush1.msra.mxu0 0.0
    %2095 = vmatprep.subr.mxu0 0.0
    %2096 = vmatpush1.msra.mxu0 0.0
    %2097 = vmatprep.subr.mxu0 0.0
    %2098 = vmatpush1.msra.mxu0 0.0
    %2099 = vmatprep.subr.mxu0 0.0
    %2100 = vmatpush1.msra.mxu0 0.0
    %2101 = vmatprep.subr.mxu0 0.0
    %2102 = vmatpush1.msra.mxu0 0.0
    %2103 = vmatprep.subr.mxu0 0.0
    %2104 = vmatpush1.msra.mxu0 0.0
    %2105 = vmatprep.mubr.f32.mxu0 0.0
    %2106 = vmatmul.mubr.f32.gmra.mrb[0].mxu0 %v2039
    %v2107 = vpop.f32.mrb[0].mxu0
    %v2108 = vadd.f32 %v2034, %v2107
    %v2109 = vpop.f32.mrb[0].mxu0
    %2110 = vdwg.mxu0
    %v2111 = vld [vmem:[%s8] sm:$0x1]
    %v2113 = vlaneseq
    %v2114 = vshrl.u32 %v2113, 7
    %v2115 = vsub.s32 0, %v2114
    %v2116 = vrot.slane %v2111, %v2115
    %v2118 = vadd.f32 %v2108, %v2116
    %vm2119 = vcmask 123904
    %2120 = vst.msk [vmem:[#allocation5] sm:$0x3] %vm2119, %v2118
    // Predicated region
    $region42: #{tpu_custom_call.1} parent=1 // pred_check
      _
    $region43: #{tpu_custom_call.1} parent=1 // pred_check_branch
      %2122 = sbr.rel (0) target = $region45
    $region44: #{tpu_custom_call.1} parent=1 // pred_region
      %s2124 = ssub.s32 32, 32
      %2125 = vsyncadd [#allocation4], %s2124
      %s2127 = sshll.u32 [#allocation5], 4
      %s2128 = int_to_ptr.vmem [resolvable:$true] %s2127
      %2130 = dma.vmem_to_hbm [thread:$0]  %s2128, 32, %s9, [#allocation4]
    $region45: #{tpu_custom_call.1} parent=1 // pred_fallthru
      _
    // Predicated region
    $region46: #{tpu_custom_call.1} parent=1 // pred_check
      _
    $region47: #{tpu_custom_call.1} parent=1 // pred_check_branch
      %2132 = sbr.rel (0) target = $region49
    $region48: #{tpu_custom_call.1} parent=1 // pred_region
      %2133 = dma.done [#allocation4], 32
    $region49: #{tpu_custom_call.1} parent=1 // pred_fallthru
      _
    %2134 = vsyncpa [#allocation3], 1
    %2135 = vsyncpa [#allocation4], 1

</llo_original>
